<compile_context>
chip_gen: v7x
topology: tpu7x:2x2x1
jax: 0.10.0
libtpu: 0.0.40
codegen_flags: <defaults>
</compile_context>

<pallas_src>
import functools

import jax
import jax.numpy as jnp
from jax.experimental import pallas as pl
from jax.experimental.pallas import tpu as pltpu


# -----------------------------------------------------------------------------
# Pallas kernel: encoders + 1-step GRU + Poniter attention + masked softmax
#                + greedy head, all on two packed VMEM slabs.
# -----------------------------------------------------------------------------
def drl4ssp_kernel(act_ref, w_ref, probs_ref, ptr_ref, logp_ref, dec_ref,
                   *, H, Cs, Cd, B, S):
    f32 = jnp.float32
    N = B * S
    NEG = -1.0e30  # finite "-inf": avoids NaN probs if a row has no valid column

    # ---- unpack the single packed weight slab (static ref-window loads) ------
    # Column order/widths MUST match pack_params().
    c = 0
    w_enc = w_ref[:2 * H, c:c + Cs + Cd]; c += Cs + Cd   # block-diag [Ws 0; 0 Wd]
    wdec  = w_ref[:H,     c:c + Cs];      c += Cs        # decoder conv weight
    w_ih  = w_ref[:,      c:c + H];       c += H          # (3H, H) GRU input weights
    ww1   = w_ref[:H,     c:c + 3 * H];   c += 3 * H      # pointer #1 weight
    ww2   = w_ref[:H,     c:c + 3 * H];   c += 3 * H      # pointer #2 weight
    b_sd  = w_ref[:2 * H, c:c + 1];       c += 1          # [bs; bd]
    b_ih  = w_ref[:,      c:c + 1];       c += 1          # (3H, 1)
    b_hh  = w_ref[:,      c:c + 1];       c += 1          # (3H, 1)
    bdec  = w_ref[:H,     c:c + 1];       c += 1
    vv1   = w_ref[:H,     c:c + 1];       c += 1
    vv2   = w_ref[:H,     c:c + 1];       c += 1

    # ---- activation slab: feature-major, batch folded into lanes (n = b*S+s) -
    x_all = act_ref[:, :N]            # (Cs+Cd, N)  [static; dynamic]
    xs    = act_ref[:Cs, :N]          # (Cs, N)     static channels (for gather)
    dec   = act_ref[:Cs, N:N + B]     # (Cs, B)     decoder_input columns
    state = act_ref[Cs:Cs + 1, :N]    # (1, N)      dynamic channel 0 (visited)

    # ---- both 1x1-conv encoders as ONE matmul (block-diagonal weight) --------
    shdh = jnp.dot(w_enc, x_all, preferred_element_type=f32) + b_sd    # (2H, N)
    sh, dh = shdh[:H], shdh[H:2 * H]                                    # (H, N) each

    dec_h = jnp.dot(wdec, dec, preferred_element_type=f32) + bdec       # (H, B)

    # ---- single-step GRU, h0 == 0 (W_hh @ h0 vanishes, only b_hh survives) ---
    gi = jnp.dot(w_ih, dec_h, preferred_element_type=f32) + b_ih        # (3H, B)
    r = jax.nn.sigmoid(gi[:H] + b_hh[:H])
    z = jax.nn.sigmoid(gi[H:2 * H] + b_hh[H:2 * H])
    n = jnp.tanh(gi[2 * H:] + r * b_hh[2 * H:])
    rnn = (1.0 - z) * n                                                  # (H, B)

    # ---- group selector E[b, n] = 1 iff column n belongs to batch row b ------
    niota = jax.lax.broadcasted_iota(jnp.int32, (B, N), 1)
    lower = jax.lax.broadcasted_iota(jnp.int32, (B, N), 0) * S          # b*S
    in_group = jnp.logical_and(niota >= lower, niota < lower + S)       # (B, N)
    ef = in_group.astype(f32)

    # ---- Poniter attention #1: ONE (H,3H)x(3H,N) matmul over cat_1 -----------
    hb = jnp.dot(rnn, ef, preferred_element_type=f32)        # (H, N) hidden bcast
    cat1 = jnp.concatenate([shdh, hb], axis=0)               # [sh; dh; hidden]
    t1 = jnp.tanh(jnp.dot(ww1, cat1, preferred_element_type=f32))       # (H, N)
    attn1 = jnp.sum(vv1 * t1, axis=0, keepdims=True)                    # (1, N)

    # grouped softmax over each batch's own S columns (no mask here, as in torch)
    m1 = jnp.max(jnp.where(in_group, attn1, NEG), axis=1, keepdims=True)  # (B,1)
    e1 = jnp.where(in_group, jnp.exp(attn1 - m1), 0.0)                    # (B,N)
    attns1 = e1 / jnp.sum(e1, axis=1, keepdims=True)          # zeros off-group

    # context vector (attns_1 . static_hidden) and broadcast back over sequence
    nt = (((1,), (1,)), ((), ()))                            # A @ B^T contraction
    dytext = jax.lax.dot_general(sh, attns1, nt, preferred_element_type=f32)  # (H,B)
    dtb = jnp.dot(dytext, ef, preferred_element_type=f32)                      # (H,N)

    # ---- Poniter attention #2 (the logits): cat_2 = [sh; dytext; dh] ---------
    cat2 = jnp.concatenate([sh, dtb, dh], axis=0)                         # (3H,N)
    t2 = jnp.tanh(jnp.dot(ww2, cat2, preferred_element_type=f32))
    so = jnp.sum(vv2 * t2, axis=0, keepdims=True)                         # (1, N)

    # ---- mask (visited nodes + column 0) + grouped softmax --------------------
    valid = jnp.logical_and(in_group,
                            jnp.logical_and(state == 0.0, niota != lower))
    logits = jnp.where(valid, so, NEG)                                    # (B, N)
    m = jnp.max(logits, axis=1, keepdims=True)
    e = jnp.exp(logits - m)            # masked entries underflow to exactly 0.0
    probs_bn = e / jnp.sum(e, axis=1, keepdims=True)                      # (B, N)

    # compact (B, N) -> (B, S): off-group entries are exactly zero, so a 0/1
    # "same column-within-group" matmul picks each batch's own S-column window.
    nio2 = jax.lax.broadcasted_iota(jnp.int32, (N, S), 0)
    sio2 = jax.lax.broadcasted_iota(jnp.int32, (N, S), 1)
    gmat = jnp.zeros((N, S), f32)
    for b in range(B):                 # static unroll, B is tiny
        gmat = gmat + (nio2 == sio2 + b * S).astype(f32)
    probs_ref[...] = jnp.dot(probs_bn, gmat, preferred_element_type=f32)  # (B, S)

    # ---- greedy head (argmax / logp / next decoder input), all in-kernel ------
    maxv = jnp.max(probs_bn, axis=1, keepdims=True)                       # (B, 1)
    ismax = jnp.logical_and(probs_bn == maxv, in_group)
    pos = jnp.min(jnp.where(ismax, niota, N), axis=1, keepdims=True)      # first max
    ptr_ref[...] = pos - jax.lax.broadcasted_iota(jnp.int32, (B, 1), 0) * S
    logp_ref[...] = jnp.log(maxv)
    onehot = (niota == pos).astype(f32)                                   # (B, N)
    dec_ref[...] = jax.lax.dot_general(onehot, xs, nt,
                                       preferred_element_type=f32)        # (B, Cs)


# -----------------------------------------------------------------------------
# One-time parameter packing: everything into a single (3H, K) fp32 slab.
# -----------------------------------------------------------------------------
def pack_params(p):
    H, Cs = p['ws'].shape
    Cd = p['wd'].shape[1]
    f32 = jnp.float32

    w_enc = jnp.zeros((2 * H, Cs + Cd), f32)
    w_enc = w_enc.at[:H, :Cs].set(p['ws']).at[H:, Cs:].set(p['wd'])
    b_sd = jnp.concatenate([p['bs'], p['bd']]).reshape(2 * H, 1)

    pieces = [                         # order/widths must match drl4ssp_kernel
        w_enc,                         # (2H, Cs+Cd)
        p['wdec'],                     # (H, Cs)
        p['w_ih'],                     # (3H, H)
        p['ww1'],                      # (H, 3H)
        p['ww2'],                      # (H, 3H)
        b_sd,                          # (2H, 1)
        p['b_ih'].reshape(3 * H, 1),
        p['b_hh'].reshape(3 * H, 1),
        p['bdec'].reshape(H, 1),
        p['vv1'].reshape(H, 1),
        p['vv2'].reshape(H, 1),
    ]

    def pad(a):
        a = a.astype(f32)
        rows = a.shape[0]
        if rows == 3 * H:
            return a
        return jnp.concatenate([a, jnp.zeros((3 * H - rows, a.shape[1]), f32)], 0)

    return jnp.concatenate([pad(a) for a in pieces], axis=1)   # (3H, K)


# -----------------------------------------------------------------------------
# Wrapper: one decode step (eval / greedy).  Only 2 input DMAs per call.
# -----------------------------------------------------------------------------
@jax.jit
def drl4ssp_forward(static, dynamic, wslab, decoder_input=None):
    B, Cs, S = static.shape
    Cd = dynamic.shape[1]
    H = wslab.shape[0] // 3
    N = B * S
    f32 = jnp.float32

    # pack observations into one feature-major slab: columns [0:N] hold
    # [static; dynamic] with column n = b*S + s; columns [N:N+B] hold the
    # decoder input (rows Cs: zero-padded).
    xs = jnp.transpose(static.astype(f32), (1, 0, 2)).reshape(Cs, N)
    xd = jnp.transpose(dynamic.astype(f32), (1, 0, 2)).reshape(Cd, N)
    if decoder_input is None:
        dec = jnp.zeros((Cs, B), f32)                 # self.x0 (zeros)
    else:
        dec = jnp.transpose(decoder_input[:, :, 0].astype(f32), (1, 0))
    act = jnp.concatenate(
        [jnp.concatenate([xs, dec], axis=1),
         jnp.concatenate([xd, jnp.zeros((Cd, B), f32)], axis=1)],
        axis=0)                                       # (Cs+Cd, N+B)

    vmem = pl.BlockSpec(memory_space=pltpu.MemorySpace.VMEM)
    probs, ptr2, logp2, dec2 = pl.pallas_call(
        functools.partial(drl4ssp_kernel, H=H, Cs=Cs, Cd=Cd, B=B, S=S),
        out_shape=(jax.ShapeDtypeStruct((B, S), f32),      # probs
                   jax.ShapeDtypeStruct((B, 1), jnp.int32),  # ptr
                   jax.ShapeDtypeStruct((B, 1), f32),        # log prob
                   jax.ShapeDtypeStruct((B, Cs), f32)),      # next decoder input
        in_specs=[vmem, vmem],
        out_specs=(vmem, vmem, vmem, vmem),
    )(act, wslab)

    return ptr2[:, 0], dec2[:, :, None], logp2[:, 0], probs


# -----------------------------------------------------------------------------
# Pure-JAX reference (mirrors the PyTorch forward, eval path) for verification.
# -----------------------------------------------------------------------------
def drl4ssp_reference(static, dynamic, p, decoder_input=None):
    hp = jax.lax.Precision.HIGHEST
    B, Cs, S = static.shape
    H = p['ws'].shape[0]
    if decoder_input is None:
        decoder_input = jnp.zeros((B, Cs, 1), jnp.float32)
    sh = jnp.einsum('hc,bcs->bhs', p['ws'], static, precision=hp) + p['bs'][None, :, None]
    dh = jnp.einsum('hc,bcs->bhs', p['wd'], dynamic, precision=hp) + p['bd'][None, :, None]
    dec_h = (jnp.einsum('hc,bcs->bhs', p['wdec'], decoder_input, precision=hp)
             + p['bdec'][None, :, None])[:, :, 0]
    gi = jnp.einsum('bh,gh->bg', dec_h, p['w_ih'], precision=hp) + p['b_ih']
    bh = p['b_hh']
    r = jax.nn.sigmoid(gi[:, :H] + bh[:H])
    z = jax.nn.sigmoid(gi[:, H:2 * H] + bh[H:2 * H])
    n = jnp.tanh(gi[:, 2 * H:] + r * bh[2 * H:])
    rnn = (1.0 - z) * n
    hidden = jnp.broadcast_to(rnn[:, :, None], (B, H, S))
    cat1 = jnp.concatenate([sh, dh, hidden], axis=1)
    t1 = jnp.tanh(jnp.einsum('hk,bks->bhs', p['ww1'], cat1, precision=hp))
    attns1 = jax.nn.softmax(jnp.einsum('h,bhs->bs', p['vv1'], t1, precision=hp), axis=1)
    dytext = jnp.einsum('bs,bhs->bh', attns1, sh, precision=hp)
    cat2 = jnp.concatenate([sh, jnp.broadcast_to(dytext[:, :, None], (B, H, S)), dh], 1)
    t2 = jnp.tanh(jnp.einsum('hk,bks->bhs', p['ww2'], cat2, precision=hp))
    so = jnp.einsum('h,bhs->bs', p['vv2'], t2, precision=hp)
    state = dynamic[:, 0, :]
    valid = (state == 0.0) & (jnp.arange(S)[None, :] != 0)
    probs = jax.nn.softmax(jnp.where(valid, so, -1e30), axis=1)
    ptr = jnp.argmax(probs, axis=1).astype(jnp.int32)
    logp = jnp.log(jnp.max(probs, axis=1))
    dec_next = jnp.take_along_axis(static, ptr[:, None, None], axis=2)
    return ptr, dec_next, logp, probs


# -----------------------------------------------------------------------------
# Deterministic parameter construction (synthetic, xavier-uniform style).
# -----------------------------------------------------------------------------
def make_params(key, static_size=4, dynamic_size=3, hidden_size=32):
    H = hidden_size

    def xavier(k, shape):
        fan_out, fan_in = shape[0], shape[1]
        limit = (6.0 / (fan_in + fan_out)) ** 0.5
        return jax.random.uniform(k, shape, jnp.float32, -limit, limit)

    ks = jax.random.split(key, 12)
    return {
        'ws': xavier(ks[0], (H, static_size)),      # static_encoder conv weight
        'bs': jnp.zeros((H,), jnp.float32),
        'wd': xavier(ks[1], (H, dynamic_size)),     # dynamic_encoder conv weight
        'bd': jnp.zeros((H,), jnp.float32),
        'wdec': xavier(ks[2], (H, static_size)),    # decoder conv weight
        'bdec': jnp.zeros((H,), jnp.float32),
        'w_ih': xavier(ks[3], (3 * H, H)),          # GRU input weights
        'b_ih': 0.01 * jax.random.normal(ks[4], (3 * H,), jnp.float32),
        'b_hh': 0.01 * jax.random.normal(ks[5], (3 * H,), jnp.float32),
        'vv1': xavier(ks[6], (1, H)).reshape(H),    # Poniter params
        'ww1': xavier(ks[7], (H, 3 * H)),
        'vv2': xavier(ks[8], (1, H)).reshape(H),
        'ww2': xavier(ks[9], (H, 3 * H)),
    }


if __name__ == "__main__":
    B, Cs, Cd, H, S = 2, 4, 3, 32, 8

    root = jax.random.PRNGKey(0)
    k_params, k_static, k_dyn = jax.random.split(root, 3)

    params = make_params(k_params, static_size=Cs, dynamic_size=Cd, hidden_size=H)
    wslab = pack_params(params)          # packed ONCE, reused every decode step

    static = jax.random.normal(k_static, (B, Cs, S), jnp.float32)
    # dynamic channel 0 is the "visited" state used for masking; every batch row
    # has some zero entries at j > 0 so the mask is non-empty.
    state0 = jnp.array([[1., 0., 1., 0., 0., 1., 0., 0.],
                        [0., 1., 0., 0., 1., 0., 0., 1.]], jnp.float32)
    dyn_rest = jax.random.normal(k_dyn, (B, Cd - 1, S), jnp.float32)
    dynamic = jnp.concatenate([state0[:, None, :], dyn_rest], axis=1)

    ptr, dec_next, logp, probs = drl4ssp_forward(static, dynamic, wslab)
    jax.block_until_ready((ptr, dec_next, logp, probs))

    # shape / sanity checks
    assert ptr.shape == (B,) and logp.shape == (B,)
    assert dec_next.shape == (B, Cs, 1) and probs.shape == (B, S)
    assert bool(jnp.all(jnp.isfinite(probs)))
    assert bool(jnp.allclose(jnp.sum(probs, axis=1), 1.0, atol=1e-5))

    # pure-JAX reference check (mirrors the PyTorch eval-mode forward)
    r_ptr, r_dec, r_logp, r_probs = drl4ssp_reference(static, dynamic, params)
    assert bool(jnp.array_equal(ptr.astype(jnp.int32), r_ptr))
    assert bool(jnp.allclose(probs, r_probs, rtol=5e-3, atol=5e-3))
    assert bool(jnp.allclose(logp, r_logp, rtol=5e-3, atol=5e-3))
    assert bool(jnp.allclose(dec_next, r_dec, rtol=5e-3, atol=5e-3))

    print("KERNEL_OK")
</pallas_src>

<mosaic_0001>
module attributes {stable_mosaic.version = 11 : i64} {
  func.func @drl4ssp_kernel(%arg0: memref<7x18xf32, #tpu.memory_space<vmem>>, %arg1: memref<96x241xf32, #tpu.memory_space<vmem>>, %arg2: memref<2x8xf32, #tpu.memory_space<vmem>>, %arg3: memref<2x1xi32, #tpu.memory_space<vmem>>, %arg4: memref<2x1xf32, #tpu.memory_space<vmem>>, %arg5: memref<2x4xf32, #tpu.memory_space<vmem>>) attributes {dimension_semantics = [], scalar_prefetch = 0 : i64, scratch_operands = 0 : i64, tpu.core_type = #tpu.core_type<tc>} {
    %c0 = arith.constant 0 : index
    %c0_0 = arith.constant 0 : index
    %0 = vector.load %arg1[%c0, %c0_0] : memref<96x241xf32, #tpu.memory_space<vmem>>, vector<64x7xf32>
    %c0_1 = arith.constant 0 : index
    %c7 = arith.constant 7 : index
    %1 = vector.load %arg1[%c0_1, %c7] : memref<96x241xf32, #tpu.memory_space<vmem>>, vector<32x4xf32>
    %c0_2 = arith.constant 0 : index
    %c11 = arith.constant 11 : index
    %2 = vector.load %arg1[%c0_2, %c11] : memref<96x241xf32, #tpu.memory_space<vmem>>, vector<96x32xf32>
    %c0_3 = arith.constant 0 : index
    %c43 = arith.constant 43 : index
    %3 = vector.load %arg1[%c0_3, %c43] : memref<96x241xf32, #tpu.memory_space<vmem>>, vector<32x96xf32>
    %c0_4 = arith.constant 0 : index
    %c139 = arith.constant 139 : index
    %4 = vector.load %arg1[%c0_4, %c139] : memref<96x241xf32, #tpu.memory_space<vmem>>, vector<32x96xf32>
    %c0_5 = arith.constant 0 : index
    %c235 = arith.constant 235 : index
    %5 = vector.load %arg1[%c0_5, %c235] : memref<96x241xf32, #tpu.memory_space<vmem>>, vector<64x1xf32>
    %c0_6 = arith.constant 0 : index
    %c236 = arith.constant 236 : index
    %6 = vector.load %arg1[%c0_6, %c236] : memref<96x241xf32, #tpu.memory_space<vmem>>, vector<96x1xf32>
    %c0_7 = arith.constant 0 : index
    %c237 = arith.constant 237 : index
    %7 = vector.load %arg1[%c0_7, %c237] : memref<96x241xf32, #tpu.memory_space<vmem>>, vector<96x1xf32>
    %c0_8 = arith.constant 0 : index
    %c238 = arith.constant 238 : index
    %8 = vector.load %arg1[%c0_8, %c238] : memref<96x241xf32, #tpu.memory_space<vmem>>, vector<32x1xf32>
    %c0_9 = arith.constant 0 : index
    %c239 = arith.constant 239 : index
    %9 = vector.load %arg1[%c0_9, %c239] : memref<96x241xf32, #tpu.memory_space<vmem>>, vector<32x1xf32>
    %c0_10 = arith.constant 0 : index
    %c240 = arith.constant 240 : index
    %10 = vector.load %arg1[%c0_10, %c240] : memref<96x241xf32, #tpu.memory_space<vmem>>, vector<32x1xf32>
    %c0_11 = arith.constant 0 : index
    %c0_12 = arith.constant 0 : index
    %11 = vector.load %arg0[%c0_11, %c0_12] : memref<7x18xf32, #tpu.memory_space<vmem>>, vector<7x16xf32>
    %c0_13 = arith.constant 0 : index
    %c0_14 = arith.constant 0 : index
    %12 = vector.load %arg0[%c0_13, %c0_14] : memref<7x18xf32, #tpu.memory_space<vmem>>, vector<4x16xf32>
    %c0_15 = arith.constant 0 : index
    %c16 = arith.constant 16 : index
    %13 = vector.load %arg0[%c0_15, %c16] : memref<7x18xf32, #tpu.memory_space<vmem>>, vector<4x2xf32>
    %c4 = arith.constant 4 : index
    %c0_16 = arith.constant 0 : index
    %14 = vector.load %arg0[%c4, %c0_16] : memref<7x18xf32, #tpu.memory_space<vmem>>, vector<1x16xf32>
    %cst = arith.constant dense<0.000000e+00> : vector<64x16xf32>
    %15 = tpu.matmul %0, %11, %cst {dimension_numbers = #tpu.dot_dimension_numbers<[1], [0], [0], [1], [0, 0, 1, 1], [], []>} : vector<64x7xf32>, vector<7x16xf32>, vector<64x16xf32> -> vector<64x16xf32>
    %16 = vector.broadcast %5 : vector<64x1xf32> to vector<64x16xf32>
    %17 = arith.addf %15, %16 : vector<64x16xf32>
    %18 = vector.extract_strided_slice %17 {offsets = [0, 0], sizes = [32, 16], strides = [1, 1]} : vector<64x16xf32> to vector<32x16xf32>
    %19 = vector.extract_strided_slice %17 {offsets = [32, 0], sizes = [32, 16], strides = [1, 1]} : vector<64x16xf32> to vector<32x16xf32>
    %cst_17 = arith.constant dense<0.000000e+00> : vector<32x2xf32>
    %20 = tpu.matmul %1, %13, %cst_17 {dimension_numbers = #tpu.dot_dimension_numbers<[1], [0], [0], [1], [0, 0, 1, 1], [], []>} : vector<32x4xf32>, vector<4x2xf32>, vector<32x2xf32> -> vector<32x2xf32>
    %21 = vector.broadcast %8 : vector<32x1xf32> to vector<32x2xf32>
    %22 = arith.addf %20, %21 : vector<32x2xf32>
    %cst_18 = arith.constant dense<0.000000e+00> : vector<96x2xf32>
    %23 = tpu.matmul %2, %22, %cst_18 {dimension_numbers = #tpu.dot_dimension_numbers<[1], [0], [0], [1], [0, 0, 1, 1], [], []>} : vector<96x32xf32>, vector<32x2xf32>, vector<96x2xf32> -> vector<96x2xf32>
    %24 = vector.broadcast %6 : vector<96x1xf32> to vector<96x2xf32>
    %25 = arith.addf %23, %24 : vector<96x2xf32>
    %26 = vector.extract_strided_slice %25 {offsets = [0, 0], sizes = [32, 2], strides = [1, 1]} : vector<96x2xf32> to vector<32x2xf32>
    %27 = vector.extract_strided_slice %7 {offsets = [0, 0], sizes = [32, 1], strides = [1, 1]} : vector<96x1xf32> to vector<32x1xf32>
    %28 = vector.broadcast %27 : vector<32x1xf32> to vector<32x2xf32>
    %29 = arith.addf %26, %28 : vector<32x2xf32>
    %30 = arith.negf %29 : vector<32x2xf32>
    %31 = math.exp %30 : vector<32x2xf32>
    %cst_19 = arith.constant 1.000000e+00 : f32
    %32 = vector.broadcast %cst_19 : f32 to vector<32x2xf32>
    %33 = arith.addf %32, %31 : vector<32x2xf32>
    %34 = arith.divf %32, %33 : vector<32x2xf32>
    %35 = vector.extract_strided_slice %25 {offsets = [32, 0], sizes = [32, 2], strides = [1, 1]} : vector<96x2xf32> to vector<32x2xf32>
    %36 = vector.extract_strided_slice %7 {offsets = [32, 0], sizes = [32, 1], strides = [1, 1]} : vector<96x1xf32> to vector<32x1xf32>
    %37 = vector.broadcast %36 : vector<32x1xf32> to vector<32x2xf32>
    %38 = arith.addf %35, %37 : vector<32x2xf32>
    %39 = arith.negf %38 : vector<32x2xf32>
    %40 = math.exp %39 : vector<32x2xf32>
    %cst_20 = arith.constant 1.000000e+00 : f32
    %41 = vector.broadcast %cst_20 : f32 to vector<32x2xf32>
    %42 = arith.addf %41, %40 : vector<32x2xf32>
    %43 = arith.divf %41, %42 : vector<32x2xf32>
    %44 = vector.extract_strided_slice %25 {offsets = [64, 0], sizes = [32, 2], strides = [1, 1]} : vector<96x2xf32> to vector<32x2xf32>
    %45 = vector.extract_strided_slice %7 {offsets = [64, 0], sizes = [32, 1], strides = [1, 1]} : vector<96x1xf32> to vector<32x1xf32>
    %46 = vector.broadcast %45 : vector<32x1xf32> to vector<32x2xf32>
    %47 = arith.mulf %34, %46 : vector<32x2xf32>
    %48 = arith.addf %44, %47 : vector<32x2xf32>
    %49 = math.tanh %48 : vector<32x2xf32>
    %cst_21 = arith.constant 1.000000e+00 : f32
    %50 = vector.broadcast %cst_21 : f32 to vector<32x2xf32>
    %51 = arith.subf %50, %43 : vector<32x2xf32>
    %52 = arith.mulf %51, %49 : vector<32x2xf32>
    %53 = tpu.iota {dimensions = array<i32: 1>} : vector<2x16xi32>
    %54 = tpu.iota {dimensions = array<i32: 0>} : vector<2x16xi32>
    %c8_i32 = arith.constant 8 : i32
    %55 = vector.broadcast %c8_i32 : i32 to vector<2x16xi32>
    %56 = arith.muli %54, %55 : vector<2x16xi32>
    %57 = arith.cmpi sge, %53, %56 : vector<2x16xi32>
    %c8_i32_22 = arith.constant 8 : i32
    %58 = vector.broadcast %c8_i32_22 : i32 to vector<2x16xi32>
    %59 = arith.addi %56, %58 : vector<2x16xi32>
    %60 = arith.cmpi slt, %53, %59 : vector<2x16xi32>
    %61 = arith.andi %57, %60 : vector<2x16xi1>
    %62 = arith.extui %61 : vector<2x16xi1> to vector<2x16xi32>
    %63 = arith.sitofp %62 : vector<2x16xi32> to vector<2x16xf32>
    %cst_23 = arith.constant dense<0.000000e+00> : vector<32x16xf32>
    %64 = tpu.matmul %52, %63, %cst_23 {dimension_numbers = #tpu.dot_dimension_numbers<[1], [0], [0], [1], [0, 0, 1, 1], [], []>} : vector<32x2xf32>, vector<2x16xf32>, vector<32x16xf32> -> vector<32x16xf32>
    %65 = tpu.concatenate %17, %64 in 0 : vector<64x16xf32>, vector<32x16xf32> -> vector<96x16xf32>
    %cst_24 = arith.constant dense<0.000000e+00> : vector<32x16xf32>
    %66 = tpu.matmul %3, %65, %cst_24 {dimension_numbers = #tpu.dot_dimension_numbers<[1], [0], [0], [1], [0, 0, 1, 1], [], []>} : vector<32x96xf32>, vector<96x16xf32>, vector<32x16xf32> -> vector<32x16xf32>
    %67 = math.tanh %66 : vector<32x16xf32>
    %68 = vector.broadcast %9 : vector<32x1xf32> to vector<32x16xf32>
    %69 = arith.mulf %68, %67 : vector<32x16xf32>
    %cst_25 = arith.constant dense<0.000000e+00> : vector<16xf32>
    %70 = vector.multi_reduction <add>, %69, %cst_25 [0] : vector<32x16xf32> to vector<16xf32>
    %71 = vector.shape_cast %70 : vector<16xf32> to vector<1x16xf32>
    %cst_26 = arith.constant -1.000000e+30 : f32
    %72 = vector.shape_cast %71 : vector<1x16xf32> to vector<1x16xf32>
    %73 = vector.broadcast %72 : vector<1x16xf32> to vector<2x16xf32>
    %74 = vector.broadcast %cst_26 : f32 to vector<2x16xf32>
    %75 = arith.select %61, %73, %74 : vector<2x16xi1>, vector<2x16xf32>
    %cst_27 = arith.constant dense<0xFF800000> : vector<2xf32>
    %76 = vector.multi_reduction <maximumf>, %75, %cst_27 [1] : vector<2x16xf32> to vector<2xf32>
    %77 = vector.shape_cast %76 : vector<2xf32> to vector<2x1xf32>
    %78 = vector.broadcast %71 : vector<1x16xf32> to vector<2x16xf32>
    %79 = vector.broadcast %77 : vector<2x1xf32> to vector<2x16xf32>
    %80 = arith.subf %78, %79 : vector<2x16xf32>
    %81 = math.exp %80 : vector<2x16xf32>
    %cst_28 = arith.constant 0.000000e+00 : f32
    %82 = vector.broadcast %cst_28 : f32 to vector<2x16xf32>
    %83 = arith.select %61, %81, %82 : vector<2x16xi1>, vector<2x16xf32>
    %cst_29 = arith.constant dense<0.000000e+00> : vector<2xf32>
    %84 = vector.multi_reduction <add>, %83, %cst_29 [1] : vector<2x16xf32> to vector<2xf32>
    %85 = vector.shape_cast %84 : vector<2xf32> to vector<2x1xf32>
    %86 = vector.broadcast %85 : vector<2x1xf32> to vector<2x16xf32>
    %87 = arith.divf %83, %86 : vector<2x16xf32>
    %cst_30 = arith.constant dense<0.000000e+00> : vector<32x2xf32>
    %88 = tpu.matmul %18, %87, %cst_30 {dimension_numbers = #tpu.dot_dimension_numbers<[1], [1], [0], [0], [0, 0, 1, 0], [], []>} : vector<32x16xf32>, vector<2x16xf32>, vector<32x2xf32> -> vector<32x2xf32>
    %cst_31 = arith.constant dense<0.000000e+00> : vector<32x16xf32>
    %89 = tpu.matmul %88, %63, %cst_31 {dimension_numbers = #tpu.dot_dimension_numbers<[1], [0], [0], [1], [0, 0, 1, 1], [], []>} : vector<32x2xf32>, vector<2x16xf32>, vector<32x16xf32> -> vector<32x16xf32>
    %90 = tpu.concatenate %18, %89, %19 in 0 : vector<32x16xf32>, vector<32x16xf32>, vector<32x16xf32> -> vector<96x16xf32>
    %cst_32 = arith.constant dense<0.000000e+00> : vector<32x16xf32>
    %91 = tpu.matmul %4, %90, %cst_32 {dimension_numbers = #tpu.dot_dimension_numbers<[1], [0], [0], [1], [0, 0, 1, 1], [], []>} : vector<32x96xf32>, vector<96x16xf32>, vector<32x16xf32> -> vector<32x16xf32>
    %92 = math.tanh %91 : vector<32x16xf32>
    %93 = vector.broadcast %10 : vector<32x1xf32> to vector<32x16xf32>
    %94 = arith.mulf %93, %92 : vector<32x16xf32>
    %cst_33 = arith.constant dense<0.000000e+00> : vector<16xf32>
    %95 = vector.multi_reduction <add>, %94, %cst_33 [0] : vector<32x16xf32> to vector<16xf32>
    %96 = vector.shape_cast %95 : vector<16xf32> to vector<1x16xf32>
    %cst_34 = arith.constant 0.000000e+00 : f32
    %97 = vector.broadcast %cst_34 : f32 to vector<1x16xf32>
    %98 = arith.cmpf oeq, %14, %97 : vector<1x16xf32>
    %99 = arith.cmpi ne, %53, %56 : vector<2x16xi32>
    %100 = vector.broadcast %98 : vector<1x16xi1> to vector<2x16xi1>
    %101 = arith.andi %100, %99 : vector<2x16xi1>
    %102 = arith.andi %61, %101 : vector<2x16xi1>
    %cst_35 = arith.constant -1.000000e+30 : f32
    %103 = vector.shape_cast %96 : vector<1x16xf32> to vector<1x16xf32>
    %104 = vector.broadcast %103 : vector<1x16xf32> to vector<2x16xf32>
    %105 = vector.broadcast %cst_35 : f32 to vector<2x16xf32>
    %106 = arith.select %102, %104, %105 : vector<2x16xi1>, vector<2x16xf32>
    %cst_36 = arith.constant dense<0xFF800000> : vector<2xf32>
    %107 = vector.multi_reduction <maximumf>, %106, %cst_36 [1] : vector<2x16xf32> to vector<2xf32>
    %108 = vector.shape_cast %107 : vector<2xf32> to vector<2x1xf32>
    %109 = vector.broadcast %108 : vector<2x1xf32> to vector<2x16xf32>
    %110 = arith.subf %106, %109 : vector<2x16xf32>
    %111 = math.exp %110 : vector<2x16xf32>
    %cst_37 = arith.constant dense<0.000000e+00> : vector<2xf32>
    %112 = vector.multi_reduction <add>, %111, %cst_37 [1] : vector<2x16xf32> to vector<2xf32>
    %113 = vector.shape_cast %112 : vector<2xf32> to vector<2x1xf32>
    %114 = vector.broadcast %113 : vector<2x1xf32> to vector<2x16xf32>
    %115 = arith.divf %111, %114 : vector<2x16xf32>
    %116 = tpu.iota {dimensions = array<i32: 0>} : vector<16x8xi32>
    %117 = tpu.iota {dimensions = array<i32: 1>} : vector<16x8xi32>
    %cst_38 = arith.constant 0.000000e+00 : f32
    %118 = vector.broadcast %cst_38 : f32 to vector<16x8xf32>
    %c0_i32 = arith.constant 0 : i32
    %119 = vector.broadcast %c0_i32 : i32 to vector<16x8xi32>
    %120 = arith.addi %117, %119 : vector<16x8xi32>
    %121 = arith.cmpi eq, %116, %120 : vector<16x8xi32>
    %122 = arith.extui %121 : vector<16x8xi1> to vector<16x8xi32>
    %123 = arith.sitofp %122 : vector<16x8xi32> to vector<16x8xf32>
    %124 = arith.addf %118, %123 : vector<16x8xf32>
    %c8_i32_39 = arith.constant 8 : i32
    %125 = vector.broadcast %c8_i32_39 : i32 to vector<16x8xi32>
    %126 = arith.addi %117, %125 : vector<16x8xi32>
    %127 = arith.cmpi eq, %116, %126 : vector<16x8xi32>
    %128 = arith.extui %127 : vector<16x8xi1> to vector<16x8xi32>
    %129 = arith.sitofp %128 : vector<16x8xi32> to vector<16x8xf32>
    %130 = arith.addf %124, %129 : vector<16x8xf32>
    %cst_40 = arith.constant dense<0.000000e+00> : vector<2x8xf32>
    %131 = tpu.matmul %115, %130, %cst_40 {dimension_numbers = #tpu.dot_dimension_numbers<[1], [0], [0], [1], [0, 0, 1, 1], [], []>} : vector<2x16xf32>, vector<16x8xf32>, vector<2x8xf32> -> vector<2x8xf32>
    %c0_41 = arith.constant 0 : index
    %c0_42 = arith.constant 0 : index
    %132 = vector.load %arg2[%c0_41, %c0_42] : memref<2x8xf32, #tpu.memory_space<vmem>>, vector<2x8xf32>
    tpu.vector_store %arg2[%c0_41, %c0_42], %131 {strides = array<i32>} : memref<2x8xf32, #tpu.memory_space<vmem>>, vector<2x8xf32>,
    %cst_43 = arith.constant dense<0xFF800000> : vector<2xf32>
    %133 = vector.multi_reduction <maximumf>, %115, %cst_43 [1] : vector<2x16xf32> to vector<2xf32>
    %134 = vector.shape_cast %133 : vector<2xf32> to vector<2x1xf32>
    %135 = vector.broadcast %134 : vector<2x1xf32> to vector<2x16xf32>
    %136 = arith.cmpf oeq, %115, %135 : vector<2x16xf32>
    %137 = arith.andi %136, %61 : vector<2x16xi1>
    %c16_i32 = arith.constant 16 : i32
    %138 = vector.broadcast %c16_i32 : i32 to vector<2x16xi32>
    %139 = arith.select %137, %53, %138 : vector<2x16xi1>, vector<2x16xi32>
    %cst_44 = arith.constant dense<2147483647> : vector<2xi32>
    %140 = vector.multi_reduction <minsi>, %139, %cst_44 [1] : vector<2x16xi32> to vector<2xi32>
    %141 = vector.shape_cast %140 : vector<2xi32> to vector<2x1xi32>
    %142 = tpu.iota {dimensions = array<i32: 0>} : vector<2x1xi32>
    %c8_i32_45 = arith.constant 8 : i32
    %143 = vector.broadcast %c8_i32_45 : i32 to vector<2x1xi32>
    %144 = arith.muli %142, %143 : vector<2x1xi32>
    %145 = arith.subi %141, %144 : vector<2x1xi32>
    %c0_46 = arith.constant 0 : index
    %c0_47 = arith.constant 0 : index
    %146 = vector.load %arg3[%c0_46, %c0_47] : memref<2x1xi32, #tpu.memory_space<vmem>>, vector<2x1xi32>
    tpu.vector_store %arg3[%c0_46, %c0_47], %145 {strides = array<i32>} : memref<2x1xi32, #tpu.memory_space<vmem>>, vector<2x1xi32>,
    %147 = math.log %134 : vector<2x1xf32>
    %c0_48 = arith.constant 0 : index
    %c0_49 = arith.constant 0 : index
    %148 = vector.load %arg4[%c0_48, %c0_49] : memref<2x1xf32, #tpu.memory_space<vmem>>, vector<2x1xf32>
    tpu.vector_store %arg4[%c0_48, %c0_49], %147 {strides = array<i32>} : memref<2x1xf32, #tpu.memory_space<vmem>>, vector<2x1xf32>,
    %149 = vector.broadcast %141 : vector<2x1xi32> to vector<2x16xi32>
    %150 = arith.cmpi eq, %53, %149 : vector<2x16xi32>
    %151 = arith.extui %150 : vector<2x16xi1> to vector<2x16xi32>
    %152 = arith.sitofp %151 : vector<2x16xi32> to vector<2x16xf32>
    %cst_50 = arith.constant dense<0.000000e+00> : vector<2x4xf32>
    %153 = tpu.matmul %152, %12, %cst_50 {dimension_numbers = #tpu.dot_dimension_numbers<[1], [1], [0], [0], [0, 0, 1, 0], [], []>} : vector<2x16xf32>, vector<4x16xf32>, vector<2x4xf32> -> vector<2x4xf32>
    %c0_51 = arith.constant 0 : index
    %c0_52 = arith.constant 0 : index
    %154 = vector.load %arg5[%c0_51, %c0_52] : memref<2x4xf32, #tpu.memory_space<vmem>>, vector<2x4xf32>
    tpu.vector_store %arg5[%c0_51, %c0_52], %153 {strides = array<i32>} : memref<2x4xf32, #tpu.memory_space<vmem>>, vector<2x4xf32>,
    return
  }
}

</mosaic_0001>

<llo_original>
// kernel: drl4ssp_forward.1
$region0: #{drl4ssp_forward.1}
  #allocation0 [shape = 'u32[]', space=smem, size = 0x4, offset = 0x4, fixed_abs, tag = 'smem constant byte address 0x4 - core index']
  #allocation1 [shape = 'u32[144,128]{1,0:T(1,128)}', space=vmem, size = 0x12000, scoped, tag = 'internal scratch']
  %s0 = inlined_call_operand.vmem [shape: f32[7,18], index: 0, kind: input, shape index: {}]
  %s1 = inlined_call_operand.hbm [shape: f32[96,241], index: 1, kind: input, shape index: {}]
  %s2 = inlined_call_operand.hbm [shape: f32[2,8], index: 2, kind: output, shape index: {0}]
  %s3 = inlined_call_operand.vmem [shape: s32[2,1], index: 3, kind: output, shape index: {1}]
  %s4 = inlined_call_operand.vmem [shape: f32[2,1], index: 4, kind: output, shape index: {2}]
  %s5 = inlined_call_operand.hbm [shape: f32[2,4], index: 5, kind: output, shape index: {3}]
  %6 = xla_tuple %s2, %s3, %s4, %s5
  %s7 = sld [smem:[#allocation0]]
  $region46: #{drl4ssp_forward.1} parent=0
    _
  %s9 = ssub.s32 1, %s7
  %s10 = scalar_select 0, %s9, %s7
  $region1: #{drl4ssp_forward.1} parent=0
    #allocation2 [shape = 'u8[98304]{0}', space=vmem, size = 0x18000, scoped, tag = 'input window, operand 1, single buffered']
    #allocation3 [shape = 's32[1]{0}', space=sflag, size = 0x4, scoped, tag = 'scoped memory for drl4ssp_forward.1']
    #allocation4 [shape = 's32[1]{0}', space=sflag, size = 0x4, scoped, tag = 'scoped memory for drl4ssp_forward.1']
    #allocation5 [shape = 'u8[1024]{0}', space=vmem, size = 0x400, scoped, tag = 'output window, operand 0, single buffered']
    #allocation6 [shape = 'u8[1024]{0}', space=vmem, size = 0x400, scoped, tag = 'output window, operand 3, single buffered']
    #allocation7 [shape = 's32[1]{0}', space=sflag, size = 0x4, scoped, tag = 'scoped memory for drl4ssp_forward.1']
    %11 = vsyncpa [#allocation3], 0
    %12 = vsyncpa [#allocation4], 0
    %13 = vsyncpa [#allocation7], 0
    // Predicated region
    $region2: #{drl4ssp_forward.1} parent=1 // pred_check
      _
    $region3: #{drl4ssp_forward.1} parent=1 // pred_check_branch
      %15 = sbr.rel (0) target = $region5
    $region4: #{drl4ssp_forward.1} parent=1 // pred_region
      _
    $region5: #{drl4ssp_forward.1} parent=1 // pred_fallthru
      _
    // Predicated region
    $region6: #{drl4ssp_forward.1} parent=1 // pred_check
      _
    $region7: #{drl4ssp_forward.1} parent=1 // pred_check_branch
      %17 = sbr.rel (0) target = $region9
    $region8: #{drl4ssp_forward.1} parent=1 // pred_region
      %s19 = ssub.s32 3072, 3072
      %20 = vsyncadd [#allocation3], %s19
      %s21 = sshll.u32 [#allocation2], 4
      %s22 = int_to_ptr.vmem [resolvable:$true] %s21
      %27 = dma.hbm_to_vmem [thread:$0]  %s1, 3072, %s22, [#allocation3], 256, 256, 16
    $region9: #{drl4ssp_forward.1} parent=1 // pred_fallthru
      _
    // Predicated region
    $region10: #{drl4ssp_forward.1} parent=1 // pred_check
      _
    $region11: #{drl4ssp_forward.1} parent=1 // pred_check_branch
      %29 = sbr.rel (0) target = $region13
    $region12: #{drl4ssp_forward.1} parent=1 // pred_region
      %30 = dma.done [#allocation3], 3072
    $region13: #{drl4ssp_forward.1} parent=1 // pred_fallthru
      _
    %v31 = vld [vmem:[#allocation2] sm:$0xff]
    %v32 = vld [vmem:[#allocation2 + $0x10] sm:$0xff]
    %v33 = vld [vmem:[#allocation2 + $0x20] sm:$0xff]
    %v34 = vld [vmem:[#allocation2 + $0x30] sm:$0xff]
    %v35 = vld [vmem:[#allocation2 + $0x40] sm:$0xff]
    %v36 = vld [vmem:[#allocation2 + $0x50] sm:$0xff]
    %v37 = vld [vmem:[#allocation2 + $0x60] sm:$0xff]
    %v38 = vld [vmem:[#allocation2 + $0x70] sm:$0xff]
    %v39 = vld [vmem:[#allocation2 + $0x80] sm:$0xff]
    %v40 = vld [vmem:[#allocation2 + $0x90] sm:$0xff]
    %v41 = vld [vmem:[#allocation2 + $0xa0] sm:$0xff]
    %v42 = vld [vmem:[#allocation2 + $0xb0] sm:$0xff]
    %v43 = vld [vmem:[#allocation2 + $0x8] sm:$0xff]
    %v44 = vld [vmem:[#allocation2 + $0x18] sm:$0xff]
    %v45 = vld [vmem:[#allocation2 + $0x28] sm:$0xff]
    %v46 = vld [vmem:[#allocation2 + $0x38] sm:$0xff]
    %v47 = vld [vmem:[#allocation2 + $0x48] sm:$0xff]
    %v48 = vld [vmem:[#allocation2 + $0x58] sm:$0xff]
    %v49 = vld [vmem:[#allocation2 + $0x68] sm:$0xff]
    %v50 = vld [vmem:[#allocation2 + $0x78] sm:$0xff]
    %v51 = vld [vmem:[#allocation2 + $0x88] sm:$0xff]
    %v52 = vld [vmem:[#allocation2 + $0x98] sm:$0xff]
    %v53 = vld [vmem:[#allocation2 + $0xa8] sm:$0xff]
    %v54 = vld [vmem:[#allocation2 + $0xb8] sm:$0xff]
    %v55 = vld [vmem:[%s0] sm:$0x7f]
    %v56 = vld [vmem:[%s0] sm:$0xf]
    %v57 = vld [vmem:[%s0 + $0x4] sm:$0x1]
    %59 = vset.pattern.permute.xlu0 107
    %60 = vperm.xlu0 %59, %v43
    %v61 = vpop.permute.xlu0 %60
    %64 = vset.pattern.permute.xlu0 107
    %65 = vperm.xlu0 %64, %v44
    %v66 = vpop.permute.xlu0 %65
    %69 = vset.pattern.permute.xlu0 107
    %70 = vperm.xlu0 %69, %v45
    %v71 = vpop.permute.xlu0 %70
    %74 = vset.pattern.permute.xlu0 107
    %75 = vperm.xlu0 %74, %v46
    %v76 = vpop.permute.xlu0 %75
    %79 = vset.pattern.permute.xlu0 107
    %80 = vperm.xlu0 %79, %v47
    %v81 = vpop.permute.xlu0 %80
    %84 = vset.pattern.permute.xlu0 107
    %85 = vperm.xlu0 %84, %v48
    %v86 = vpop.permute.xlu0 %85
    %89 = vset.pattern.permute.xlu0 107
    %90 = vperm.xlu0 %89, %v49
    %v91 = vpop.permute.xlu0 %90
    %94 = vset.pattern.permute.xlu0 107
    %95 = vperm.xlu0 %94, %v50
    %v96 = vpop.permute.xlu0 %95
    %vm98 = vcmask 56320
    %v100 = vsel %vm98, %v31, 0
    %v103 = vsel %vm98, %v32, 0
    %v106 = vsel %vm98, %v33, 0
    %v109 = vsel %vm98, %v34, 0
    %v112 = vsel %vm98, %v35, 0
    %v115 = vsel %vm98, %v36, 0
    %v118 = vsel %vm98, %v37, 0
    %v121 = vsel %vm98, %v38, 0
    %vm123 = vcmask 1046528
    %v125 = vsel %vm123, %v55, 0
    %127 = vmatprep.subr.mxu0 0.0
    %128 = vmatpush1.msra.mxu0 %v125
    %129 = vmatprep.subr.mxu0 0.0
    %130 = vmatpush1.msra.mxu0 0.0
    %131 = vmatprep.subr.mxu0 0.0
    %132 = vmatpush1.msra.mxu0 0.0
    %133 = vmatprep.subr.mxu0 0.0
    %134 = vmatpush1.msra.mxu0 0.0
    %135 = vmatprep.subr.mxu0 0.0
    %136 = vmatpush1.msra.mxu0 0.0
    %137 = vmatprep.subr.mxu0 0.0
    %138 = vmatpush1.msra.mxu0 0.0
    %139 = vmatprep.subr.mxu0 0.0
    %140 = vmatpush1.msra.mxu0 0.0
    %141 = vmatprep.subr.mxu0 0.0
    %142 = vmatpush1.msra.mxu0 0.0
    %143 = vmatprep.subr.mxu0 0.0
    %144 = vmatpush1.msra.mxu0 0.0
    %145 = vmatprep.subr.mxu0 0.0
    %146 = vmatpush1.msra.mxu0 0.0
    %147 = vmatprep.subr.mxu0 0.0
    %148 = vmatpush1.msra.mxu0 0.0
    %149 = vmatprep.subr.mxu0 0.0
    %150 = vmatpush1.msra.mxu0 0.0
    %151 = vmatprep.subr.mxu0 0.0
    %152 = vmatpush1.msra.mxu0 0.0
    %153 = vmatprep.subr.mxu0 0.0
    %154 = vmatpush1.msra.mxu0 0.0
    %155 = vmatprep.subr.mxu0 0.0
    %156 = vmatpush1.msra.mxu0 0.0
    %157 = vmatprep.subr.mxu0 0.0
    %158 = vmatpush1.msra.mxu0 0.0
    %159 = vmatprep.subr.mxu0 0.0
    %160 = vmatpush1.msra.mxu0 0.0
    %161 = vmatprep.subr.mxu0 0.0
    %162 = vmatpush1.msra.mxu0 0.0
    %163 = vmatprep.subr.mxu0 0.0
    %164 = vmatpush1.msra.mxu0 0.0
    %165 = vmatprep.subr.mxu0 0.0
    %166 = vmatpush1.msra.mxu0 0.0
    %167 = vmatprep.subr.mxu0 0.0
    %168 = vmatpush1.msra.mxu0 0.0
    %169 = vmatprep.subr.mxu0 0.0
    %170 = vmatpush1.msra.mxu0 0.0
    %171 = vmatprep.subr.mxu0 0.0
    %172 = vmatpush1.msra.mxu0 0.0
    %173 = vmatprep.subr.mxu0 0.0
    %174 = vmatpush1.msra.mxu0 0.0
    %175 = vmatprep.subr.mxu0 0.0
    %176 = vmatpush1.msra.mxu0 0.0
    %177 = vmatprep.subr.mxu0 0.0
    %178 = vmatpush1.msra.mxu0 0.0
    %179 = vmatprep.subr.mxu0 0.0
    %180 = vmatpush1.msra.mxu0 0.0
    %181 = vmatprep.subr.mxu0 0.0
    %182 = vmatpush1.msra.mxu0 0.0
    %183 = vmatprep.subr.mxu0 0.0
    %184 = vmatpush1.msra.mxu0 0.0
    %185 = vmatprep.subr.mxu0 0.0
    %186 = vmatpush1.msra.mxu0 0.0
    %187 = vmatprep.subr.mxu0 0.0
    %188 = vmatpush1.msra.mxu0 0.0
    %189 = vmatprep.subr.mxu0 0.0
    %190 = vmatpush1.msra.mxu0 0.0
    %191 = vmatprep.mubr.f32.mxu0 0.0
    %192 = vmatmul.mubr.f32.gmra.mrb[0].mxu0 %v100
    %v193 = vpop.f32.mrb[0].mxu0
    %v194 = vadd.f32 %v61, %v193
    %v195 = vpop.f32.mrb[0].mxu0
    %196 = vmatprep.mubr.f32.mxu0 0.0
    %197 = vmatmul.mubr.f32.gmra.mrb[0].mxu0 %v103
    %v198 = vpop.f32.mrb[0].mxu0
    %v199 = vadd.f32 %v66, %v198
    %v200 = vpop.f32.mrb[0].mxu0
    %201 = vmatprep.mubr.f32.mxu0 0.0
    %202 = vmatmul.mubr.f32.gmra.mrb[0].mxu0 %v106
    %v203 = vpop.f32.mrb[0].mxu0
    %v204 = vadd.f32 %v71, %v203
    %v205 = vpop.f32.mrb[0].mxu0
    %206 = vmatprep.mubr.f32.mxu0 0.0
    %207 = vmatmul.mubr.f32.gmra.mrb[0].mxu0 %v109
    %v208 = vpop.f32.mrb[0].mxu0
    %v209 = vadd.f32 %v76, %v208
    %v210 = vpop.f32.mrb[0].mxu0
    %211 = vmatprep.mubr.f32.mxu0 0.0
    %212 = vmatmul.mubr.f32.gmra.mrb[0].mxu0 %v112
    %v213 = vpop.f32.mrb[0].mxu0
    %v214 = vadd.f32 %v81, %v213
    %v215 = vpop.f32.mrb[0].mxu0
    %216 = vmatprep.mubr.f32.mxu0 0.0
    %217 = vmatmul.mubr.f32.gmra.mrb[0].mxu0 %v115
    %v218 = vpop.f32.mrb[0].mxu0
    %v219 = vadd.f32 %v86, %v218
    %v220 = vpop.f32.mrb[0].mxu0
    %221 = vmatprep.mubr.f32.mxu0 0.0
    %222 = vmatmul.mubr.f32.gmra.mrb[0].mxu0 %v118
    %v223 = vpop.f32.mrb[0].mxu0
    %v224 = vadd.f32 %v91, %v223
    %v225 = vpop.f32.mrb[0].mxu0
    %226 = vmatprep.mubr.f32.mxu0 0.0
    %227 = vmatmul.mubr.f32.gmra.mrb[0].mxu0 %v121
    %v228 = vpop.f32.mrb[0].mxu0
    %v229 = vadd.f32 %v96, %v228
    %v230 = vpop.f32.mrb[0].mxu0
    %231 = vdwg.mxu0
    %232 = vset.pattern.permute.xlu0 110
    %233 = vperm.xlu0 %232, %v43
    %v234 = vpop.permute.xlu0 %233
    %236 = vset.pattern.permute.xlu0 110
    %237 = vperm.xlu0 %236, %v44
    %v238 = vpop.permute.xlu0 %237
    %240 = vset.pattern.permute.xlu0 110
    %241 = vperm.xlu0 %240, %v45
    %v242 = vpop.permute.xlu0 %241
    %244 = vset.pattern.permute.xlu0 110
    %245 = vperm.xlu0 %244, %v46
    %v246 = vpop.permute.xlu0 %245
    %248 = vrot.lane.b32.xlu0 %v31, 121
    %v249 = vpop.permute.xlu0 %248
    %250 = vrot.lane.b32.xlu0 %v32, 121
    %v251 = vpop.permute.xlu0 %250
    %252 = vrot.lane.b32.xlu0 %v33, 121
    %v253 = vpop.permute.xlu0 %252
    %254 = vrot.lane.b32.xlu0 %v34, 121
    %v255 = vpop.permute.xlu0 %254
    %257 = vrot.lane.b32.xlu0 %v56, 112
    %v258 = vpop.permute.xlu0 %257
    %vm259 = vcmask 31744
    %v260 = vsel %vm259, %v249, 0
    %v262 = vsel %vm259, %v251, 0
    %v264 = vsel %vm259, %v253, 0
    %v266 = vsel %vm259, %v255, 0
    %vm268 = vcmask 1043456
    %v269 = vsel %vm268, %v258, 0
    %271 = vmatprep.subr.mxu0 0.0
    %272 = vmatpush1.msra.mxu0 %v269
    %273 = vmatprep.subr.mxu0 0.0
    %274 = vmatpush1.msra.mxu0 0.0
    %275 = vmatprep.subr.mxu0 0.0
    %276 = vmatpush1.msra.mxu0 0.0
    %277 = vmatprep.subr.mxu0 0.0
    %278 = vmatpush1.msra.mxu0 0.0
    %279 = vmatprep.subr.mxu0 0.0
    %280 = vmatpush1.msra.mxu0 0.0
    %281 = vmatprep.subr.mxu0 0.0
    %282 = vmatpush1.msra.mxu0 0.0
    %283 = vmatprep.subr.mxu0 0.0
    %284 = vmatpush1.msra.mxu0 0.0
    %285 = vmatprep.subr.mxu0 0.0
    %286 = vmatpush1.msra.mxu0 0.0
    %287 = vmatprep.subr.mxu0 0.0
    %288 = vmatpush1.msra.mxu0 0.0
    %289 = vmatprep.subr.mxu0 0.0
    %290 = vmatpush1.msra.mxu0 0.0
    %291 = vmatprep.subr.mxu0 0.0
    %292 = vmatpush1.msra.mxu0 0.0
    %293 = vmatprep.subr.mxu0 0.0
    %294 = vmatpush1.msra.mxu0 0.0
    %295 = vmatprep.subr.mxu0 0.0
    %296 = vmatpush1.msra.mxu0 0.0
    %297 = vmatprep.subr.mxu0 0.0
    %298 = vmatpush1.msra.mxu0 0.0
    %299 = vmatprep.subr.mxu0 0.0
    %300 = vmatpush1.msra.mxu0 0.0
    %301 = vmatprep.subr.mxu0 0.0
    %302 = vmatpush1.msra.mxu0 0.0
    %303 = vmatprep.subr.mxu0 0.0
    %304 = vmatpush1.msra.mxu0 0.0
    %305 = vmatprep.subr.mxu0 0.0
    %306 = vmatpush1.msra.mxu0 0.0
    %307 = vmatprep.subr.mxu0 0.0
    %308 = vmatpush1.msra.mxu0 0.0
    %309 = vmatprep.subr.mxu0 0.0
    %310 = vmatpush1.msra.mxu0 0.0
    %311 = vmatprep.subr.mxu0 0.0
    %312 = vmatpush1.msra.mxu0 0.0
    %313 = vmatprep.subr.mxu0 0.0
    %314 = vmatpush1.msra.mxu0 0.0
    %315 = vmatprep.subr.mxu0 0.0
    %316 = vmatpush1.msra.mxu0 0.0
    %317 = vmatprep.subr.mxu0 0.0
    %318 = vmatpush1.msra.mxu0 0.0
    %319 = vmatprep.subr.mxu0 0.0
    %320 = vmatpush1.msra.mxu0 0.0
    %321 = vmatprep.subr.mxu0 0.0
    %322 = vmatpush1.msra.mxu0 0.0
    %323 = vmatprep.subr.mxu0 0.0
    %324 = vmatpush1.msra.mxu0 0.0
    %325 = vmatprep.subr.mxu0 0.0
    %326 = vmatpush1.msra.mxu0 0.0
    %327 = vmatprep.subr.mxu0 0.0
    %328 = vmatpush1.msra.mxu0 0.0
    %329 = vmatprep.subr.mxu0 0.0
    %330 = vmatpush1.msra.mxu0 0.0
    %331 = vmatprep.subr.mxu0 0.0
    %332 = vmatpush1.msra.mxu0 0.0
    %333 = vmatprep.subr.mxu0 0.0
    %334 = vmatpush1.msra.mxu0 0.0
    %335 = vmatprep.mubr.f32.mxu0 0.0
    %336 = vmatmul.mubr.f32.gmra.mrb[0].mxu0 %v260
    %v337 = vpop.f32.mrb[0].mxu0
    %v338 = vadd.f32 %v234, %v337
    %v339 = vpop.f32.mrb[0].mxu0
    %340 = vmatprep.mubr.f32.mxu0 0.0
    %341 = vmatmul.mubr.f32.gmra.mrb[0].mxu0 %v262
    %v342 = vpop.f32.mrb[0].mxu0
    %v343 = vadd.f32 %v238, %v342
    %v344 = vpop.f32.mrb[0].mxu0
    %345 = vmatprep.mubr.f32.mxu0 0.0
    %346 = vmatmul.mubr.f32.gmra.mrb[0].mxu0 %v264
    %v347 = vpop.f32.mrb[0].mxu0
    %v348 = vadd.f32 %v242, %v347
    %v349 = vpop.f32.mrb[0].mxu0
    %350 = vmatprep.mubr.f32.mxu0 0.0
    %351 = vmatmul.mubr.f32.gmra.mrb[0].mxu0 %v266
    %v352 = vpop.f32.mrb[0].mxu0
    %v353 = vadd.f32 %v246, %v352
    %v354 = vpop.f32.mrb[0].mxu0
    %355 = vdwg.mxu0
    %356 = vset.pattern.permute.xlu0 108
    %357 = vperm.xlu0 %356, %v43
    %v358 = vpop.permute.xlu0 %357
    %360 = vset.pattern.permute.xlu0 108
    %361 = vperm.xlu0 %360, %v44
    %v362 = vpop.permute.xlu0 %361
    %364 = vset.pattern.permute.xlu0 108
    %365 = vperm.xlu0 %364, %v45
    %v366 = vpop.permute.xlu0 %365
    %368 = vset.pattern.permute.xlu0 108
    %369 = vperm.xlu0 %368, %v46
    %v370 = vpop.permute.xlu0 %369
    %372 = vset.pattern.permute.xlu0 108
    %373 = vperm.xlu0 %372, %v47
    %v374 = vpop.permute.xlu0 %373
    %376 = vset.pattern.permute.xlu0 108
    %377 = vperm.xlu0 %376, %v48
    %v378 = vpop.permute.xlu0 %377
    %380 = vset.pattern.permute.xlu0 108
    %381 = vperm.xlu0 %380, %v49
    %v382 = vpop.permute.xlu0 %381
    %384 = vset.pattern.permute.xlu0 108
    %385 = vperm.xlu0 %384, %v50
    %v386 = vpop.permute.xlu0 %385
    %389 = vset.pattern.permute.xlu0 108
    %390 = vperm.xlu0 %389, %v51
    %v391 = vpop.permute.xlu0 %390
    %394 = vset.pattern.permute.xlu0 108
    %395 = vperm.xlu0 %394, %v52
    %v396 = vpop.permute.xlu0 %395
    %399 = vset.pattern.permute.xlu0 108
    %400 = vperm.xlu0 %399, %v53
    %v401 = vpop.permute.xlu0 %400
    %404 = vset.pattern.permute.xlu0 108
    %405 = vperm.xlu0 %404, %v54
    %v406 = vpop.permute.xlu0 %405
    %412 = vrot.lane.b32.xlu0 %v31, 117
    %v413 = vpop.permute.xlu0 %412
    %414 = vrot.lane.b32.xlu0 %v32, 117
    %v415 = vpop.permute.xlu0 %414
    %416 = vrot.lane.b32.xlu0 %v33, 117
    %v417 = vpop.permute.xlu0 %416
    %418 = vrot.lane.b32.xlu0 %v34, 117
    %v419 = vpop.permute.xlu0 %418
    %420 = vrot.lane.b32.xlu0 %v35, 117
    %v421 = vpop.permute.xlu0 %420
    %422 = vrot.lane.b32.xlu0 %v36, 117
    %v423 = vpop.permute.xlu0 %422
    %424 = vrot.lane.b32.xlu0 %v37, 117
    %v425 = vpop.permute.xlu0 %424
    %426 = vrot.lane.b32.xlu0 %v38, 117
    %v427 = vpop.permute.xlu0 %426
    %428 = vrot.lane.b32.xlu0 %v39, 117
    %v429 = vpop.permute.xlu0 %428
    %430 = vrot.lane.b32.xlu0 %v40, 117
    %v431 = vpop.permute.xlu0 %430
    %432 = vrot.lane.b32.xlu0 %v41, 117
    %v433 = vpop.permute.xlu0 %432
    %434 = vrot.lane.b32.xlu0 %v42, 117
    %v435 = vpop.permute.xlu0 %434
    %vm436 = vcmask 261120
    %v437 = vsel %vm436, %v413, 0
    %v439 = vsel %vm436, %v415, 0
    %v441 = vsel %vm436, %v417, 0
    %v443 = vsel %vm436, %v419, 0
    %v445 = vsel %vm436, %v421, 0
    %v447 = vsel %vm436, %v423, 0
    %v449 = vsel %vm436, %v425, 0
    %v451 = vsel %vm436, %v427, 0
    %v453 = vsel %vm436, %v429, 0
    %v455 = vsel %vm436, %v431, 0
    %v457 = vsel %vm436, %v433, 0
    %v459 = vsel %vm436, %v435, 0
    %461 = vmatprep.subr.mxu0 0.0
    %462 = vmatpush1.msra.mxu0 %v338
    %463 = vmatprep.subr.mxu0 0.0
    %464 = vmatpush1.msra.mxu0 %v343
    %465 = vmatprep.subr.mxu0 0.0
    %466 = vmatpush1.msra.mxu0 %v348
    %467 = vmatprep.subr.mxu0 0.0
    %468 = vmatpush1.msra.mxu0 %v353
    %469 = vmatprep.subr.mxu0 0.0
    %470 = vmatpush1.msra.mxu0 0.0
    %471 = vmatprep.subr.mxu0 0.0
    %472 = vmatpush1.msra.mxu0 0.0
    %473 = vmatprep.subr.mxu0 0.0
    %474 = vmatpush1.msra.mxu0 0.0
    %475 = vmatprep.subr.mxu0 0.0
    %476 = vmatpush1.msra.mxu0 0.0
    %477 = vmatprep.subr.mxu0 0.0
    %478 = vmatpush1.msra.mxu0 0.0
    %479 = vmatprep.subr.mxu0 0.0
    %480 = vmatpush1.msra.mxu0 0.0
    %481 = vmatprep.subr.mxu0 0.0
    %482 = vmatpush1.msra.mxu0 0.0
    %483 = vmatprep.subr.mxu0 0.0
    %484 = vmatpush1.msra.mxu0 0.0
    %485 = vmatprep.subr.mxu0 0.0
    %486 = vmatpush1.msra.mxu0 0.0
    %487 = vmatprep.subr.mxu0 0.0
    %488 = vmatpush1.msra.mxu0 0.0
    %489 = vmatprep.subr.mxu0 0.0
    %490 = vmatpush1.msra.mxu0 0.0
    %491 = vmatprep.subr.mxu0 0.0
    %492 = vmatpush1.msra.mxu0 0.0
    %493 = vmatprep.subr.mxu0 0.0
    %494 = vmatpush1.msra.mxu0 0.0
    %495 = vmatprep.subr.mxu0 0.0
    %496 = vmatpush1.msra.mxu0 0.0
    %497 = vmatprep.subr.mxu0 0.0
    %498 = vmatpush1.msra.mxu0 0.0
    %499 = vmatprep.subr.mxu0 0.0
    %500 = vmatpush1.msra.mxu0 0.0
    %501 = vmatprep.subr.mxu0 0.0
    %502 = vmatpush1.msra.mxu0 0.0
    %503 = vmatprep.subr.mxu0 0.0
    %504 = vmatpush1.msra.mxu0 0.0
    %505 = vmatprep.subr.mxu0 0.0
    %506 = vmatpush1.msra.mxu0 0.0
    %507 = vmatprep.subr.mxu0 0.0
    %508 = vmatpush1.msra.mxu0 0.0
    %509 = vmatprep.subr.mxu0 0.0
    %510 = vmatpush1.msra.mxu0 0.0
    %511 = vmatprep.subr.mxu0 0.0
    %512 = vmatpush1.msra.mxu0 0.0
    %513 = vmatprep.subr.mxu0 0.0
    %514 = vmatpush1.msra.mxu0 0.0
    %515 = vmatprep.subr.mxu0 0.0
    %516 = vmatpush1.msra.mxu0 0.0
    %517 = vmatprep.subr.mxu0 0.0
    %518 = vmatpush1.msra.mxu0 0.0
    %519 = vmatprep.subr.mxu0 0.0
    %520 = vmatpush1.msra.mxu0 0.0
    %521 = vmatprep.subr.mxu0 0.0
    %522 = vmatpush1.msra.mxu0 0.0
    %523 = vmatprep.subr.mxu0 0.0
    %524 = vmatpush1.msra.mxu0 0.0
    %525 = vmatprep.mubr.f32.mxu0 0.0
    %526 = vmatmul.mubr.f32.gmra.mrb[0].mxu0 %v437
    %v527 = vpop.f32.mrb[0].mxu0
    %v528 = vadd.f32 %v358, %v527
    %v529 = vpop.f32.mrb[0].mxu0
    %530 = vmatprep.mubr.f32.mxu0 0.0
    %531 = vmatmul.mubr.f32.gmra.mrb[0].mxu0 %v439
    %v532 = vpop.f32.mrb[0].mxu0
    %v533 = vadd.f32 %v362, %v532
    %v534 = vpop.f32.mrb[0].mxu0
    %535 = vmatprep.mubr.f32.mxu0 0.0
    %536 = vmatmul.mubr.f32.gmra.mrb[0].mxu0 %v441
    %v537 = vpop.f32.mrb[0].mxu0
    %v538 = vadd.f32 %v366, %v537
    %v539 = vpop.f32.mrb[0].mxu0
    %540 = vmatprep.mubr.f32.mxu0 0.0
    %541 = vmatmul.mubr.f32.gmra.mrb[0].mxu0 %v443
    %v542 = vpop.f32.mrb[0].mxu0
    %v543 = vadd.f32 %v370, %v542
    %v544 = vpop.f32.mrb[0].mxu0
    %545 = vmatprep.mubr.f32.mxu0 0.0
    %546 = vmatmul.mubr.f32.gmra.mrb[0].mxu0 %v445
    %v547 = vpop.f32.mrb[0].mxu0
    %v548 = vadd.f32 %v374, %v547
    %v549 = vpop.f32.mrb[0].mxu0
    %550 = vmatprep.mubr.f32.mxu0 0.0
    %551 = vmatmul.mubr.f32.gmra.mrb[0].mxu0 %v447
    %v552 = vpop.f32.mrb[0].mxu0
    %v553 = vadd.f32 %v378, %v552
    %v554 = vpop.f32.mrb[0].mxu0
    %555 = vmatprep.mubr.f32.mxu0 0.0
    %556 = vmatmul.mubr.f32.gmra.mrb[0].mxu0 %v449
    %v557 = vpop.f32.mrb[0].mxu0
    %v558 = vadd.f32 %v382, %v557
    %v559 = vpop.f32.mrb[0].mxu0
    %560 = vmatprep.mubr.f32.mxu0 0.0
    %561 = vmatmul.mubr.f32.gmra.mrb[0].mxu0 %v451
    %v562 = vpop.f32.mrb[0].mxu0
    %v563 = vadd.f32 %v386, %v562
    %v564 = vpop.f32.mrb[0].mxu0
    %565 = vmatprep.mubr.f32.mxu0 0.0
    %566 = vmatmul.mubr.f32.gmra.mrb[0].mxu0 %v453
    %v567 = vpop.f32.mrb[0].mxu0
    %v568 = vadd.f32 %v391, %v567
    %v569 = vpop.f32.mrb[0].mxu0
    %570 = vmatprep.mubr.f32.mxu0 0.0
    %571 = vmatmul.mubr.f32.gmra.mrb[0].mxu0 %v455
    %v572 = vpop.f32.mrb[0].mxu0
    %v573 = vadd.f32 %v396, %v572
    %v574 = vpop.f32.mrb[0].mxu0
    %575 = vmatprep.mubr.f32.mxu0 0.0
    %576 = vmatmul.mubr.f32.gmra.mrb[0].mxu0 %v457
    %v577 = vpop.f32.mrb[0].mxu0
    %v578 = vadd.f32 %v401, %v577
    %v579 = vpop.f32.mrb[0].mxu0
    %580 = vmatprep.mubr.f32.mxu0 0.0
    %581 = vmatmul.mubr.f32.gmra.mrb[0].mxu0 %v459
    %v582 = vpop.f32.mrb[0].mxu0
    %v583 = vadd.f32 %v406, %v582
    %v584 = vpop.f32.mrb[0].mxu0
    %585 = vdwg.mxu0
    %586 = vset.pattern.permute.xlu0 109
    %587 = vperm.xlu0 %586, %v43
    %v588 = vpop.permute.xlu0 %587
    %590 = vset.pattern.permute.xlu0 109
    %591 = vperm.xlu0 %590, %v44
    %v592 = vpop.permute.xlu0 %591
    %594 = vset.pattern.permute.xlu0 109
    %595 = vperm.xlu0 %594, %v45
    %v596 = vpop.permute.xlu0 %595
    %598 = vset.pattern.permute.xlu0 109
    %599 = vperm.xlu0 %598, %v46
    %v600 = vpop.permute.xlu0 %599
    %v602 = vadd.f32 %v528, %v588
    %v603 = vadd.f32 %v533, %v592
    %v604 = vadd.f32 %v538, %v596
    %v605 = vadd.f32 %v543, %v600
    %v606 = vxor.u32 %v602, 2147483648
    %v607 = vxor.u32 %v603, 2147483648
    %v608 = vxor.u32 %v604, 2147483648
    %v609 = vxor.u32 %v605, 2147483648
    %v610 = vmul.f32 %v606, 1.442695
    %v611 = vpow.pop %v610
    %v612 = vmul.f32 %v607, 1.442695
    %v613 = vpow.pop %v612
    %v614 = vmul.f32 %v608, 1.442695
    %v615 = vpow.pop %v614
    %v616 = vmul.f32 %v609, 1.442695
    %v617 = vpow.pop %v616
    %v618 = vadd.f32 %v611, 1.0
    %v619 = vadd.f32 %v613, 1.0
    %v620 = vadd.f32 %v615, 1.0
    %v621 = vadd.f32 %v617, 1.0
    %v622 = vrcp.pop %v618
    %v623 = vmul.f32 1.0, %v622
    %v624 = vrcp.pop %v619
    %v625 = vmul.f32 1.0, %v624
    %v626 = vrcp.pop %v620
    %v627 = vmul.f32 1.0, %v626
    %v628 = vrcp.pop %v621
    %v629 = vmul.f32 1.0, %v628
    %630 = vset.pattern.permute.xlu0 109
    %631 = vperm.xlu0 %630, %v47
    %v632 = vpop.permute.xlu0 %631
    %634 = vset.pattern.permute.xlu0 109
    %635 = vperm.xlu0 %634, %v48
    %v636 = vpop.permute.xlu0 %635
    %638 = vset.pattern.permute.xlu0 109
    %639 = vperm.xlu0 %638, %v49
    %v640 = vpop.permute.xlu0 %639
    %642 = vset.pattern.permute.xlu0 109
    %643 = vperm.xlu0 %642, %v50
    %v644 = vpop.permute.xlu0 %643
    %v646 = vadd.f32 %v548, %v632
    %v647 = vadd.f32 %v553, %v636
    %v648 = vadd.f32 %v558, %v640
    %v649 = vadd.f32 %v563, %v644
    %v650 = vxor.u32 %v646, 2147483648
    %v651 = vxor.u32 %v647, 2147483648
    %v652 = vxor.u32 %v648, 2147483648
    %v653 = vxor.u32 %v649, 2147483648
    %v654 = vmul.f32 %v650, 1.442695
    %v655 = vpow.pop %v654
    %v656 = vmul.f32 %v651, 1.442695
    %v657 = vpow.pop %v656
    %v658 = vmul.f32 %v652, 1.442695
    %v659 = vpow.pop %v658
    %v660 = vmul.f32 %v653, 1.442695
    %v661 = vpow.pop %v660
    %v662 = vadd.f32 %v655, 1.0
    %v663 = vadd.f32 %v657, 1.0
    %v664 = vadd.f32 %v659, 1.0
    %v665 = vadd.f32 %v661, 1.0
    %v666 = vrcp.pop %v662
    %v667 = vmul.f32 1.0, %v666
    %v668 = vrcp.pop %v663
    %v669 = vmul.f32 1.0, %v668
    %v670 = vrcp.pop %v664
    %v671 = vmul.f32 1.0, %v670
    %v672 = vrcp.pop %v665
    %v673 = vmul.f32 1.0, %v672
    %674 = vset.pattern.permute.xlu0 109
    %675 = vperm.xlu0 %674, %v51
    %v676 = vpop.permute.xlu0 %675
    %678 = vset.pattern.permute.xlu0 109
    %679 = vperm.xlu0 %678, %v52
    %v680 = vpop.permute.xlu0 %679
    %682 = vset.pattern.permute.xlu0 109
    %683 = vperm.xlu0 %682, %v53
    %v684 = vpop.permute.xlu0 %683
    %686 = vset.pattern.permute.xlu0 109
    %687 = vperm.xlu0 %686, %v54
    %v688 = vpop.permute.xlu0 %687
    %v690 = vmul.f32 %v623, %v676
    %v691 = vmul.f32 %v625, %v680
    %v692 = vmul.f32 %v627, %v684
    %v693 = vmul.f32 %v629, %v688
    %v694 = vadd.f32 %v568, %v690
    %v695 = vadd.f32 %v573, %v691
    %v696 = vadd.f32 %v578, %v692
    %v697 = vadd.f32 %v583, %v693
    %v698 = vtanh.pop %v694
    %v699 = vtanh.pop %v695
    %v700 = vtanh.pop %v696
    %v701 = vtanh.pop %v697
    %v702 = vsub.f32 1.0, %v667
    %v703 = vsub.f32 1.0, %v669
    %v704 = vsub.f32 1.0, %v671
    %v705 = vsub.f32 1.0, %v673
    %v706 = vmul.f32 %v702, %v698
    %v707 = vmul.f32 %v703, %v699
    %v708 = vmul.f32 %v704, %v700
    %v709 = vmul.f32 %v705, %v701
    %v710 = vlaneseq
    %v711 = vand.u32 %v710, 127
    %v712 = vlaneseq
    %v713 = vshrl.u32 %v712, 7
    %v714 = vmul.u32 %v713, 8
    %vm715 = vcmp.ge.s32.totalorder %v711, %v714
    %v716 = vadd.s32 %v714, 8
    %vm717 = vcmp.lt.s32.totalorder %v711, %v716
    %vm718 = vmand %vm715, %vm717
    %v719 = vsel %vm718, 1, 0
    %v720 = vcvt.s32.f32 %v719
    %vm721 = vcmask 15360
    %v723 = vsel %vm721, %v706, 0
    %v726 = vsel %vm721, %v707, 0
    %v729 = vsel %vm721, %v708, 0
    %v732 = vsel %vm721, %v709, 0
    %vm734 = vcmask 1041408
    %v736 = vsel %vm734, %v720, 0
    %738 = vmatprep.subr.mxu0 0.0
    %739 = vmatpush1.msra.mxu0 %v736
    %740 = vmatprep.subr.mxu0 0.0
    %741 = vmatpush1.msra.mxu0 0.0
    %742 = vmatprep.subr.mxu0 0.0
    %743 = vmatpush1.msra.mxu0 0.0
    %744 = vmatprep.subr.mxu0 0.0
    %745 = vmatpush1.msra.mxu0 0.0
    %746 = vmatprep.subr.mxu0 0.0
    %747 = vmatpush1.msra.mxu0 0.0
    %748 = vmatprep.subr.mxu0 0.0
    %749 = vmatpush1.msra.mxu0 0.0
    %750 = vmatprep.subr.mxu0 0.0
    %751 = vmatpush1.msra.mxu0 0.0
    %752 = vmatprep.subr.mxu0 0.0
    %753 = vmatpush1.msra.mxu0 0.0
    %754 = vmatprep.subr.mxu0 0.0
    %755 = vmatpush1.msra.mxu0 0.0
    %756 = vmatprep.subr.mxu0 0.0
    %757 = vmatpush1.msra.mxu0 0.0
    %758 = vmatprep.subr.mxu0 0.0
    %759 = vmatpush1.msra.mxu0 0.0
    %760 = vmatprep.subr.mxu0 0.0
    %761 = vmatpush1.msra.mxu0 0.0
    %762 = vmatprep.subr.mxu0 0.0
    %763 = vmatpush1.msra.mxu0 0.0
    %764 = vmatprep.subr.mxu0 0.0
    %765 = vmatpush1.msra.mxu0 0.0
    %766 = vmatprep.subr.mxu0 0.0
    %767 = vmatpush1.msra.mxu0 0.0
    %768 = vmatprep.subr.mxu0 0.0
    %769 = vmatpush1.msra.mxu0 0.0
    %770 = vmatprep.subr.mxu0 0.0
    %771 = vmatpush1.msra.mxu0 0.0
    %772 = vmatprep.subr.mxu0 0.0
    %773 = vmatpush1.msra.mxu0 0.0
    %774 = vmatprep.subr.mxu0 0.0
    %775 = vmatpush1.msra.mxu0 0.0
    %776 = vmatprep.subr.mxu0 0.0
    %777 = vmatpush1.msra.mxu0 0.0
    %778 = vmatprep.subr.mxu0 0.0
    %779 = vmatpush1.msra.mxu0 0.0
    %780 = vmatprep.subr.mxu0 0.0
    %781 = vmatpush1.msra.mxu0 0.0
    %782 = vmatprep.subr.mxu0 0.0
    %783 = vmatpush1.msra.mxu0 0.0
    %784 = vmatprep.subr.mxu0 0.0
    %785 = vmatpush1.msra.mxu0 0.0
    %786 = vmatprep.subr.mxu0 0.0
    %787 = vmatpush1.msra.mxu0 0.0
    %788 = vmatprep.subr.mxu0 0.0
    %789 = vmatpush1.msra.mxu0 0.0
    %790 = vmatprep.subr.mxu0 0.0
    %791 = vmatpush1.msra.mxu0 0.0
    %792 = vmatprep.subr.mxu0 0.0
    %793 = vmatpush1.msra.mxu0 0.0
    %794 = vmatprep.subr.mxu0 0.0
    %795 = vmatpush1.msra.mxu0 0.0
    %796 = vmatprep.subr.mxu0 0.0
    %797 = vmatpush1.msra.mxu0 0.0
    %798 = vmatprep.subr.mxu0 0.0
    %799 = vmatpush1.msra.mxu0 0.0
    %800 = vmatprep.subr.mxu0 0.0
    %801 = vmatpush1.msra.mxu0 0.0
    %802 = vmatprep.mubr.f32.mxu0 0.0
    %803 = vmatmul.mubr.f32.gmra.mrb[0].mxu0 %v723
    %v804 = vpop.f32.mrb[0].mxu0
    %v805 = vadd.f32 0.0, %v804
    %v806 = vpop.f32.mrb[0].mxu0
    %807 = vmatprep.mubr.f32.mxu0 0.0
    %808 = vmatmul.mubr.f32.gmra.mrb[0].mxu0 %v726
    %v809 = vpop.f32.mrb[0].mxu0
    %v810 = vadd.f32 0.0, %v809
    %v811 = vpop.f32.mrb[0].mxu0
    %812 = vmatprep.mubr.f32.mxu0 0.0
    %813 = vmatmul.mubr.f32.gmra.mrb[0].mxu0 %v729
    %v814 = vpop.f32.mrb[0].mxu0
    %v815 = vadd.f32 0.0, %v814
    %v816 = vpop.f32.mrb[0].mxu0
    %817 = vmatprep.mubr.f32.mxu0 0.0
    %818 = vmatmul.mubr.f32.gmra.mrb[0].mxu0 %v732
    %v819 = vpop.f32.mrb[0].mxu0
    %v820 = vadd.f32 0.0, %v819
    %v821 = vpop.f32.mrb[0].mxu0
    %822 = vdwg.mxu0
    %823 = vrot.lane.b32.xlu0 %v31, 85
    %v824 = vpop.permute.xlu0 %823
    %825 = vrot.lane.b32.xlu0 %v43, 85
    %v826 = vpop.permute.xlu0 %825
    %827 = vrot.lane.b32.xlu0 %v32, 85
    %v828 = vpop.permute.xlu0 %827
    %829 = vrot.lane.b32.xlu0 %v44, 85
    %v830 = vpop.permute.xlu0 %829
    %831 = vrot.lane.b32.xlu0 %v33, 85
    %v832 = vpop.permute.xlu0 %831
    %833 = vrot.lane.b32.xlu0 %v45, 85
    %v834 = vpop.permute.xlu0 %833
    %835 = vrot.lane.b32.xlu0 %v34, 85
    %v836 = vpop.permute.xlu0 %835
    %837 = vrot.lane.b32.xlu0 %v46, 85
    %v838 = vpop.permute.xlu0 %837
    %vm839 = vcmask 695296
    %v840 = vsel %vm839, %v824, %v826
    %v841 = vsel %vm839, %v828, %v830
    %v842 = vsel %vm839, %v832, %v834
    %v843 = vsel %vm839, %v836, %v838
    %vm844 = vcmask 785408
    %v845 = vsel %vm844, %v840, 0
    %v847 = vsel %vm844, %v841, 0
    %v849 = vsel %vm844, %v842, 0
    %v851 = vsel %vm844, %v843, 0
    %853 = vmatprep.subr.mxu0 0.0
    %854 = vmatpush1.msra.mxu0 %v194
    %855 = vmatprep.subr.mxu0 0.0
    %856 = vmatpush1.msra.mxu0 %v199
    %857 = vmatprep.subr.mxu0 0.0
    %858 = vmatpush1.msra.mxu0 %v204
    %859 = vmatprep.subr.mxu0 0.0
    %860 = vmatpush1.msra.mxu0 %v209
    %861 = vmatprep.subr.mxu0 0.0
    %862 = vmatpush1.msra.mxu0 %v214
    %863 = vmatprep.subr.mxu0 0.0
    %864 = vmatpush1.msra.mxu0 %v219
    %865 = vmatprep.subr.mxu0 0.0
    %866 = vmatpush1.msra.mxu0 %v224
    %867 = vmatprep.subr.mxu0 0.0
    %868 = vmatpush1.msra.mxu0 %v229
    %869 = vmatprep.subr.mxu0 0.0
    %870 = vmatpush1.msra.mxu0 %v805
    %871 = vmatprep.subr.mxu0 0.0
    %872 = vmatpush1.msra.mxu0 %v810
    %873 = vmatprep.subr.mxu0 0.0
    %874 = vmatpush1.msra.mxu0 %v815
    %875 = vmatprep.subr.mxu0 0.0
    %876 = vmatpush1.msra.mxu0 %v820
    %877 = vmatprep.subr.mxu0 0.0
    %878 = vmatpush1.msra.mxu0 0.0
    %879 = vmatprep.subr.mxu0 0.0
    %880 = vmatpush1.msra.mxu0 0.0
    %881 = vmatprep.subr.mxu0 0.0
    %882 = vmatpush1.msra.mxu0 0.0
    %883 = vmatprep.subr.mxu0 0.0
    %884 = vmatpush1.msra.mxu0 0.0
    %885 = vmatprep.subr.mxu0 0.0
    %886 = vmatpush1.msra.mxu0 0.0
    %887 = vmatprep.subr.mxu0 0.0
    %888 = vmatpush1.msra.mxu0 0.0
    %889 = vmatprep.subr.mxu0 0.0
    %890 = vmatpush1.msra.mxu0 0.0
    %891 = vmatprep.subr.mxu0 0.0
    %892 = vmatpush1.msra.mxu0 0.0
    %893 = vmatprep.subr.mxu0 0.0
    %894 = vmatpush1.msra.mxu0 0.0
    %895 = vmatprep.subr.mxu0 0.0
    %896 = vmatpush1.msra.mxu0 0.0
    %897 = vmatprep.subr.mxu0 0.0
    %898 = vmatpush1.msra.mxu0 0.0
    %899 = vmatprep.subr.mxu0 0.0
    %900 = vmatpush1.msra.mxu0 0.0
    %901 = vmatprep.subr.mxu0 0.0
    %902 = vmatpush1.msra.mxu0 0.0
    %903 = vmatprep.subr.mxu0 0.0
    %904 = vmatpush1.msra.mxu0 0.0
    %905 = vmatprep.subr.mxu0 0.0
    %906 = vmatpush1.msra.mxu0 0.0
    %907 = vmatprep.subr.mxu0 0.0
    %908 = vmatpush1.msra.mxu0 0.0
    %909 = vmatprep.subr.mxu0 0.0
    %910 = vmatpush1.msra.mxu0 0.0
    %911 = vmatprep.subr.mxu0 0.0
    %912 = vmatpush1.msra.mxu0 0.0
    %913 = vmatprep.subr.mxu0 0.0
    %914 = vmatpush1.msra.mxu0 0.0
    %915 = vmatprep.subr.mxu0 0.0
    %916 = vmatpush1.msra.mxu0 0.0
    %917 = vmatprep.mubr.f32.mxu0 0.0
    %918 = vmatmul.mubr.f32.gmra.mrb[0].mxu0 %v845
    %v919 = vpop.f32.mrb[0].mxu0
    %v920 = vadd.f32 0.0, %v919
    %v921 = vpop.f32.mrb[0].mxu0
    %922 = vmatprep.mubr.f32.mxu0 0.0
    %923 = vmatmul.mubr.f32.gmra.mrb[0].mxu0 %v847
    %v924 = vpop.f32.mrb[0].mxu0
    %v925 = vadd.f32 0.0, %v924
    %v926 = vpop.f32.mrb[0].mxu0
    %927 = vmatprep.mubr.f32.mxu0 0.0
    %928 = vmatmul.mubr.f32.gmra.mrb[0].mxu0 %v849
    %v929 = vpop.f32.mrb[0].mxu0
    %v930 = vadd.f32 0.0, %v929
    %v931 = vpop.f32.mrb[0].mxu0
    %932 = vmatprep.mubr.f32.mxu0 0.0
    %933 = vmatmul.mubr.f32.gmra.mrb[0].mxu0 %v851
    %v934 = vpop.f32.mrb[0].mxu0
    %v935 = vadd.f32 0.0, %v934
    %v936 = vpop.f32.mrb[0].mxu0
    %937 = vdwg.mxu0
    %v938 = vtanh.pop %v920
    %v939 = vtanh.pop %v925
    %v940 = vtanh.pop %v930
    %v941 = vtanh.pop %v935
    %942 = vset.pattern.permute.xlu0 111
    %943 = vperm.xlu0 %942, %v43
    %v944 = vpop.permute.xlu0 %943
    %946 = vset.pattern.permute.xlu0 111
    %947 = vperm.xlu0 %946, %v44
    %v948 = vpop.permute.xlu0 %947
    %950 = vset.pattern.permute.xlu0 111
    %951 = vperm.xlu0 %950, %v45
    %v952 = vpop.permute.xlu0 %951
    %954 = vset.pattern.permute.xlu0 111
    %955 = vperm.xlu0 %954, %v46
    %v956 = vpop.permute.xlu0 %955
    %v958 = vmul.f32 %v944, %v938
    %v959 = vmul.f32 %v948, %v939
    %v960 = vmul.f32 %v952, %v940
    %v961 = vmul.f32 %v956, %v941
    %vm962 = vcmask 130048
    %v963 = vsel %vm962, %v958, 0.0
    %v964 = vsel %vm962, %v959, 0.0
    %v965 = vadd.f32 %v963, %v964
    %v966 = vsel %vm962, %v960, 0.0
    %v967 = vadd.f32 %v965, %v966
    %v968 = vsel %vm962, %v961, 0.0
    %v969 = vadd.f32 %v967, %v968
    %v970 = vrot.slane %v969, 4
    %v971 = vadd.f32 %v969, %v970
    %v972 = vrot.slane %v971, 2
    %v973 = vadd.f32 %v971, %v972
    %v974 = vrot.slane %v973, 1
    %v975 = vadd.f32 %v973, %v974
    %v976 = vsel %vm718, %v975, -1e+30
    %vm977 = vcmask 123904
    %v978 = vsel %vm977, %v976, -inf
    %979 = vmax.xlane.f32.xlu0 %v978
    %v980 = vpop.xlane.xlu0 %979
    %v981 = vsub.f32 %v975, %v980
    %v982 = vmul.f32 %v981, 1.442695
    %v983 = vpow.pop %v982
    %v984 = vsel %vm718, %v983, 0.0
    %v985 = vsel %vm977, %v984, 0.0
    %986 = vadd.xlane.f32.xlu0 %v985
    %v987 = vpop.xlane.xlu0 %986
    %v988 = vrcp.pop %v987
    %v989 = vmul.f32 %v984, %v988
    %v991 = vsel %vm962, %v194, 0
    %v994 = vsel %vm962, %v199, 0
    %v997 = vsel %vm962, %v204, 0
    %v1000 = vsel %vm962, %v209, 0
    %v1003 = vsel %vm962, %v989, 0
    %1005 = vmatprep.subr.mxu0 0.0
    %1006 = vmatpush1.xpose.msra.mxu0 %v1003
    %1007 = vmatprep.subr.mxu0 0.0
    %1008 = vmatpush1.xpose.msra.mxu0 0.0
    %1009 = vmatprep.subr.mxu0 0.0
    %1010 = vmatpush1.xpose.msra.mxu0 0.0
    %1011 = vmatprep.subr.mxu0 0.0
    %1012 = vmatpush1.xpose.msra.mxu0 0.0
    %1013 = vmatprep.subr.mxu0 0.0
    %1014 = vmatpush1.xpose.msra.mxu0 0.0
    %1015 = vmatprep.subr.mxu0 0.0
    %1016 = vmatpush1.xpose.msra.mxu0 0.0
    %1017 = vmatprep.subr.mxu0 0.0
    %1018 = vmatpush1.xpose.msra.mxu0 0.0
    %1019 = vmatprep.subr.mxu0 0.0
    %1020 = vmatpush1.xpose.msra.mxu0 0.0
    %1021 = vmatprep.subr.mxu0 0.0
    %1022 = vmatpush1.xpose.msra.mxu0 0.0
    %1023 = vmatprep.subr.mxu0 0.0
    %1024 = vmatpush1.xpose.msra.mxu0 0.0
    %1025 = vmatprep.subr.mxu0 0.0
    %1026 = vmatpush1.xpose.msra.mxu0 0.0
    %1027 = vmatprep.subr.mxu0 0.0
    %1028 = vmatpush1.xpose.msra.mxu0 0.0
    %1029 = vmatprep.subr.mxu0 0.0
    %1030 = vmatpush1.xpose.msra.mxu0 0.0
    %1031 = vmatprep.subr.mxu0 0.0
    %1032 = vmatpush1.xpose.msra.mxu0 0.0
    %1033 = vmatprep.subr.mxu0 0.0
    %1034 = vmatpush1.xpose.msra.mxu0 0.0
    %1035 = vmatprep.subr.mxu0 0.0
    %1036 = vmatpush1.xpose.msra.mxu0 0.0
    %1037 = vmatprep.subr.mxu0 0.0
    %1038 = vmatpush1.xpose.msra.mxu0 0.0
    %1039 = vmatprep.subr.mxu0 0.0
    %1040 = vmatpush1.xpose.msra.mxu0 0.0
    %1041 = vmatprep.subr.mxu0 0.0
    %1042 = vmatpush1.xpose.msra.mxu0 0.0
    %1043 = vmatprep.subr.mxu0 0.0
    %1044 = vmatpush1.xpose.msra.mxu0 0.0
    %1045 = vmatprep.subr.mxu0 0.0
    %1046 = vmatpush1.xpose.msra.mxu0 0.0
    %1047 = vmatprep.subr.mxu0 0.0
    %1048 = vmatpush1.xpose.msra.mxu0 0.0
    %1049 = vmatprep.subr.mxu0 0.0
    %1050 = vmatpush1.xpose.msra.mxu0 0.0
    %1051 = vmatprep.subr.mxu0 0.0
    %1052 = vmatpush1.xpose.msra.mxu0 0.0
    %1053 = vmatprep.subr.mxu0 0.0
    %1054 = vmatpush1.xpose.msra.mxu0 0.0
    %1055 = vmatprep.subr.mxu0 0.0
    %1056 = vmatpush1.xpose.msra.mxu0 0.0
    %1057 = vmatprep.subr.mxu0 0.0
    %1058 = vmatpush1.xpose.msra.mxu0 0.0
    %1059 = vmatprep.subr.mxu0 0.0
    %1060 = vmatpush1.xpose.msra.mxu0 0.0
    %1061 = vmatprep.subr.mxu0 0.0
    %1062 = vmatpush1.xpose.msra.mxu0 0.0
    %1063 = vmatprep.subr.mxu0 0.0
    %1064 = vmatpush1.xpose.msra.mxu0 0.0
    %1065 = vmatprep.subr.mxu0 0.0
    %1066 = vmatpush1.xpose.msra.mxu0 0.0
    %1067 = vmatprep.subr.mxu0 0.0
    %1068 = vmatpush1.xpose.msra.mxu0 0.0
    %1069 = vmatprep.mubr.f32.mxu0 0.0
    %1070 = vmatmul.mubr.f32.gmra.mrb[0].mxu0 %v991
    %v1071 = vpop.f32.mrb[0].mxu0
    %v1072 = vadd.f32 0.0, %v1071
    %v1073 = vpop.f32.mrb[0].mxu0
    %1074 = vmatprep.mubr.f32.mxu0 0.0
    %1075 = vmatmul.mubr.f32.gmra.mrb[0].mxu0 %v994
    %v1076 = vpop.f32.mrb[0].mxu0
    %v1077 = vadd.f32 0.0, %v1076
    %v1078 = vpop.f32.mrb[0].mxu0
    %1079 = vmatprep.mubr.f32.mxu0 0.0
    %1080 = vmatmul.mubr.f32.gmra.mrb[0].mxu0 %v997
    %v1081 = vpop.f32.mrb[0].mxu0
    %v1082 = vadd.f32 0.0, %v1081
    %v1083 = vpop.f32.mrb[0].mxu0
    %1084 = vmatprep.mubr.f32.mxu0 0.0
    %1085 = vmatmul.mubr.f32.gmra.mrb[0].mxu0 %v1000
    %v1086 = vpop.f32.mrb[0].mxu0
    %v1087 = vadd.f32 0.0, %v1086
    %v1088 = vpop.f32.mrb[0].mxu0
    %1089 = vdwg.mxu0
    %v1091 = vsel %vm721, %v1072, 0
    %v1094 = vsel %vm721, %v1077, 0
    %v1097 = vsel %vm721, %v1082, 0
    %v1100 = vsel %vm721, %v1087, 0
    %1102 = vmatprep.subr.mxu0 0.0
    %1103 = vmatpush1.msra.mxu0 %v736
    %1104 = vmatprep.subr.mxu0 0.0
    %1105 = vmatpush1.msra.mxu0 0.0
    %1106 = vmatprep.subr.mxu0 0.0
    %1107 = vmatpush1.msra.mxu0 0.0
    %1108 = vmatprep.subr.mxu0 0.0
    %1109 = vmatpush1.msra.mxu0 0.0
    %1110 = vmatprep.subr.mxu0 0.0
    %1111 = vmatpush1.msra.mxu0 0.0
    %1112 = vmatprep.subr.mxu0 0.0
    %1113 = vmatpush1.msra.mxu0 0.0
    %1114 = vmatprep.subr.mxu0 0.0
    %1115 = vmatpush1.msra.mxu0 0.0
    %1116 = vmatprep.subr.mxu0 0.0
    %1117 = vmatpush1.msra.mxu0 0.0
    %1118 = vmatprep.subr.mxu0 0.0
    %1119 = vmatpush1.msra.mxu0 0.0
    %1120 = vmatprep.subr.mxu0 0.0
    %1121 = vmatpush1.msra.mxu0 0.0
    %1122 = vmatprep.subr.mxu0 0.0
    %1123 = vmatpush1.msra.mxu0 0.0
    %1124 = vmatprep.subr.mxu0 0.0
    %1125 = vmatpush1.msra.mxu0 0.0
    %1126 = vmatprep.subr.mxu0 0.0
    %1127 = vmatpush1.msra.mxu0 0.0
    %1128 = vmatprep.subr.mxu0 0.0
    %1129 = vmatpush1.msra.mxu0 0.0
    %1130 = vmatprep.subr.mxu0 0.0
    %1131 = vmatpush1.msra.mxu0 0.0
    %1132 = vmatprep.subr.mxu0 0.0
    %1133 = vmatpush1.msra.mxu0 0.0
    %1134 = vmatprep.subr.mxu0 0.0
    %1135 = vmatpush1.msra.mxu0 0.0
    %1136 = vmatprep.subr.mxu0 0.0
    %1137 = vmatpush1.msra.mxu0 0.0
    %1138 = vmatprep.subr.mxu0 0.0
    %1139 = vmatpush1.msra.mxu0 0.0
    %1140 = vmatprep.subr.mxu0 0.0
    %1141 = vmatpush1.msra.mxu0 0.0
    %1142 = vmatprep.subr.mxu0 0.0
    %1143 = vmatpush1.msra.mxu0 0.0
    %1144 = vmatprep.subr.mxu0 0.0
    %1145 = vmatpush1.msra.mxu0 0.0
    %1146 = vmatprep.subr.mxu0 0.0
    %1147 = vmatpush1.msra.mxu0 0.0
    %1148 = vmatprep.subr.mxu0 0.0
    %1149 = vmatpush1.msra.mxu0 0.0
    %1150 = vmatprep.subr.mxu0 0.0
    %1151 = vmatpush1.msra.mxu0 0.0
    %1152 = vmatprep.subr.mxu0 0.0
    %1153 = vmatpush1.msra.mxu0 0.0
    %1154 = vmatprep.subr.mxu0 0.0
    %1155 = vmatpush1.msra.mxu0 0.0
    %1156 = vmatprep.subr.mxu0 0.0
    %1157 = vmatpush1.msra.mxu0 0.0
    %1158 = vmatprep.subr.mxu0 0.0
    %1159 = vmatpush1.msra.mxu0 0.0
    %1160 = vmatprep.subr.mxu0 0.0
    %1161 = vmatpush1.msra.mxu0 0.0
    %1162 = vmatprep.subr.mxu0 0.0
    %1163 = vmatpush1.msra.mxu0 0.0
    %1164 = vmatprep.subr.mxu0 0.0
    %1165 = vmatpush1.msra.mxu0 0.0
    %1166 = vmatprep.mubr.f32.mxu0 0.0
    %1167 = vmatmul.mubr.f32.gmra.mrb[0].mxu0 %v1091
    %v1168 = vpop.f32.mrb[0].mxu0
    %v1169 = vadd.f32 0.0, %v1168
    %v1170 = vpop.f32.mrb[0].mxu0
    %1171 = vmatprep.mubr.f32.mxu0 0.0
    %1172 = vmatmul.mubr.f32.gmra.mrb[0].mxu0 %v1094
    %v1173 = vpop.f32.mrb[0].mxu0
    %v1174 = vadd.f32 0.0, %v1173
    %v1175 = vpop.f32.mrb[0].mxu0
    %1176 = vmatprep.mubr.f32.mxu0 0.0
    %1177 = vmatmul.mubr.f32.gmra.mrb[0].mxu0 %v1097
    %v1178 = vpop.f32.mrb[0].mxu0
    %v1179 = vadd.f32 0.0, %v1178
    %v1180 = vpop.f32.mrb[0].mxu0
    %1181 = vmatprep.mubr.f32.mxu0 0.0
    %1182 = vmatmul.mubr.f32.gmra.mrb[0].mxu0 %v1100
    %v1183 = vpop.f32.mrb[0].mxu0
    %v1184 = vadd.f32 0.0, %v1183
    %v1185 = vpop.f32.mrb[0].mxu0
    %1186 = vdwg.mxu0
    %1187 = vrot.lane.b32.xlu0 %v43, 117
    %v1188 = vpop.permute.xlu0 %1187
    %1189 = vrot.lane.b32.xlu0 %v44, 117
    %v1190 = vpop.permute.xlu0 %1189
    %1191 = vrot.lane.b32.xlu0 %v45, 117
    %v1192 = vpop.permute.xlu0 %1191
    %1193 = vrot.lane.b32.xlu0 %v46, 117
    %v1194 = vpop.permute.xlu0 %1193
    %v1195 = vsel %vm844, %v1188, 0
    %v1197 = vsel %vm844, %v1190, 0
    %v1199 = vsel %vm844, %v1192, 0
    %v1201 = vsel %vm844, %v1194, 0
    %1203 = vmatprep.subr.mxu0 0.0
    %1204 = vmatpush1.msra.mxu0 %v194
    %1205 = vmatprep.subr.mxu0 0.0
    %1206 = vmatpush1.msra.mxu0 %v199
    %1207 = vmatprep.subr.mxu0 0.0
    %1208 = vmatpush1.msra.mxu0 %v204
    %1209 = vmatprep.subr.mxu0 0.0
    %1210 = vmatpush1.msra.mxu0 %v209
    %1211 = vmatprep.subr.mxu0 0.0
    %1212 = vmatpush1.msra.mxu0 %v1169
    %1213 = vmatprep.subr.mxu0 0.0
    %1214 = vmatpush1.msra.mxu0 %v1174
    %1215 = vmatprep.subr.mxu0 0.0
    %1216 = vmatpush1.msra.mxu0 %v1179
    %1217 = vmatprep.subr.mxu0 0.0
    %1218 = vmatpush1.msra.mxu0 %v1184
    %1219 = vmatprep.subr.mxu0 0.0
    %1220 = vmatpush1.msra.mxu0 %v214
    %1221 = vmatprep.subr.mxu0 0.0
    %1222 = vmatpush1.msra.mxu0 %v219
    %1223 = vmatprep.subr.mxu0 0.0
    %1224 = vmatpush1.msra.mxu0 %v224
    %1225 = vmatprep.subr.mxu0 0.0
    %1226 = vmatpush1.msra.mxu0 %v229
    %1227 = vmatprep.subr.mxu0 0.0
    %1228 = vmatpush1.msra.mxu0 0.0
    %1229 = vmatprep.subr.mxu0 0.0
    %1230 = vmatpush1.msra.mxu0 0.0
    %1231 = vmatprep.subr.mxu0 0.0
    %1232 = vmatpush1.msra.mxu0 0.0
    %1233 = vmatprep.subr.mxu0 0.0
    %1234 = vmatpush1.msra.mxu0 0.0
    %1235 = vmatprep.subr.mxu0 0.0
    %1236 = vmatpush1.msra.mxu0 0.0
    %1237 = vmatprep.subr.mxu0 0.0
    %1238 = vmatpush1.msra.mxu0 0.0
    %1239 = vmatprep.subr.mxu0 0.0
    %1240 = vmatpush1.msra.mxu0 0.0
    %1241 = vmatprep.subr.mxu0 0.0
    %1242 = vmatpush1.msra.mxu0 0.0
    %1243 = vmatprep.subr.mxu0 0.0
    %1244 = vmatpush1.msra.mxu0 0.0
    %1245 = vmatprep.subr.mxu0 0.0
    %1246 = vmatpush1.msra.mxu0 0.0
    %1247 = vmatprep.subr.mxu0 0.0
    %1248 = vmatpush1.msra.mxu0 0.0
    %1249 = vmatprep.subr.mxu0 0.0
    %1250 = vmatpush1.msra.mxu0 0.0
    %1251 = vmatprep.subr.mxu0 0.0
    %1252 = vmatpush1.msra.mxu0 0.0
    %1253 = vmatprep.subr.mxu0 0.0
    %1254 = vmatpush1.msra.mxu0 0.0
    %1255 = vmatprep.subr.mxu0 0.0
    %1256 = vmatpush1.msra.mxu0 0.0
    %1257 = vmatprep.subr.mxu0 0.0
    %1258 = vmatpush1.msra.mxu0 0.0
    %1259 = vmatprep.subr.mxu0 0.0
    %1260 = vmatpush1.msra.mxu0 0.0
    %1261 = vmatprep.subr.mxu0 0.0
    %1262 = vmatpush1.msra.mxu0 0.0
    %1263 = vmatprep.subr.mxu0 0.0
    %1264 = vmatpush1.msra.mxu0 0.0
    %1265 = vmatprep.subr.mxu0 0.0
    %1266 = vmatpush1.msra.mxu0 0.0
    %1267 = vmatprep.mubr.f32.mxu0 0.0
    %1268 = vmatmul.mubr.f32.gmra.mrb[0].mxu0 %v1195
    %v1269 = vpop.f32.mrb[0].mxu0
    %v1270 = vadd.f32 0.0, %v1269
    %v1271 = vpop.f32.mrb[0].mxu0
    %1272 = vmatprep.mubr.f32.mxu0 0.0
    %1273 = vmatmul.mubr.f32.gmra.mrb[0].mxu0 %v1197
    %v1274 = vpop.f32.mrb[0].mxu0
    %v1275 = vadd.f32 0.0, %v1274
    %v1276 = vpop.f32.mrb[0].mxu0
    %1277 = vmatprep.mubr.f32.mxu0 0.0
    %1278 = vmatmul.mubr.f32.gmra.mrb[0].mxu0 %v1199
    %v1279 = vpop.f32.mrb[0].mxu0
    %v1280 = vadd.f32 0.0, %v1279
    %v1281 = vpop.f32.mrb[0].mxu0
    %1282 = vmatprep.mubr.f32.mxu0 0.0
    %1283 = vmatmul.mubr.f32.gmra.mrb[0].mxu0 %v1201
    %v1284 = vpop.f32.mrb[0].mxu0
    %v1285 = vadd.f32 0.0, %v1284
    %v1286 = vpop.f32.mrb[0].mxu0
    %1287 = vdwg.mxu0
    %v1288 = vtanh.pop %v1270
    %v1289 = vtanh.pop %v1275
    %v1290 = vtanh.pop %v1280
    %v1291 = vtanh.pop %v1285
    %1292 = vset.pattern.permute.xlu0 112
    %1293 = vperm.xlu0 %1292, %v43
    %v1294 = vpop.permute.xlu0 %1293
    %1296 = vset.pattern.permute.xlu0 112
    %1297 = vperm.xlu0 %1296, %v44
    %v1298 = vpop.permute.xlu0 %1297
    %1300 = vset.pattern.permute.xlu0 112
    %1301 = vperm.xlu0 %1300, %v45
    %v1302 = vpop.permute.xlu0 %1301
    %1304 = vset.pattern.permute.xlu0 112
    %1305 = vperm.xlu0 %1304, %v46
    %v1306 = vpop.permute.xlu0 %1305
    %v1308 = vmul.f32 %v1294, %v1288
    %v1309 = vmul.f32 %v1298, %v1289
    %v1310 = vmul.f32 %v1302, %v1290
    %v1311 = vmul.f32 %v1306, %v1291
    %v1312 = vsel %vm962, %v1308, 0.0
    %v1313 = vsel %vm962, %v1309, 0.0
    %v1314 = vadd.f32 %v1312, %v1313
    %v1315 = vsel %vm962, %v1310, 0.0
    %v1316 = vadd.f32 %v1314, %v1315
    %v1317 = vsel %vm962, %v1311, 0.0
    %v1318 = vadd.f32 %v1316, %v1317
    %v1319 = vrot.slane %v1318, 4
    %v1320 = vadd.f32 %v1318, %v1319
    %v1321 = vrot.slane %v1320, 2
    %v1322 = vadd.f32 %v1320, %v1321
    %v1323 = vrot.slane %v1322, 1
    %v1324 = vadd.f32 %v1322, %v1323
    %vm1325 = vcmp.eq.f32.partialorder %v57, 0.0
    %vm1326 = vcmp.ne.s32.totalorder %v711, %v714
    %v1327 = vsel %vm1325, 1, 0
    %v1328 = vlaneseq
    %v1329 = vshrl.u32 %v1328, 7
    %v1330 = vsub.s32 0, %v1329
    %v1331 = vrot.slane %v1327, %v1330
    %vm1332 = vcmp.eq.s32.totalorder %v1331, 1
    %vm1333 = vmand %vm1332, %vm1326
    %vm1334 = vmand %vm718, %vm1333
    %v1335 = vsel %vm1334, %v1324, -1e+30
    %v1336 = vsel %vm977, %v1335, -inf
    %1337 = vmax.xlane.f32.xlu0 %v1336
    %v1338 = vpop.xlane.xlu0 %1337
    %v1339 = vsub.f32 %v1335, %v1338
    %v1340 = vmul.f32 %v1339, 1.442695
    %v1341 = vpow.pop %v1340
    %v1342 = vsel %vm977, %v1341, 0.0
    %1343 = vadd.xlane.f32.xlu0 %v1342
    %v1344 = vpop.xlane.xlu0 %1343
    %v1345 = vrcp.pop %v1344
    %v1346 = vmul.f32 %v1341, %v1345
    %v1347 = vadd.s32 %v713, 8
    %vm1348 = vcmp.eq.s32.totalorder %v713, %v711
    %vm1349 = vcmp.eq.s32.totalorder %v1347, %v711
    %v1350 = vsel %vm1348, 1, 0
    %v1351 = vsel %vm1349, 1, 0
    %v1352 = vcvt.s32.f32 %v1350
    %v1353 = vcvt.s32.f32 %v1351
    %v1354 = vadd.f32 %v1352, 0.0
    %v1355 = vadd.f32 %v1353, 0.0
    %v1356 = vadd.s32 %v711, 8
    %vm1357 = vcmp.eq.s32.totalorder %v713, %v1356
    %vm1358 = vcmp.eq.s32.totalorder %v1347, %v1356
    %v1359 = vsel %vm1357, 1, 0
    %v1360 = vsel %vm1358, 1, 0
    %v1361 = vcvt.s32.f32 %v1359
    %v1362 = vcvt.s32.f32 %v1360
    %v1363 = vadd.f32 %v1354, %v1361
    %v1364 = vadd.f32 %v1355, %v1362
    %v1366 = vsel %vm962, %v1346, 0
    %1368 = vmatprep.subr.mxu0 0.0
    %1369 = vmatpush1.msra.mxu0 %v1363
    %1370 = vmatprep.subr.mxu0 0.0
    %1371 = vmatpush1.msra.mxu0 %v1364
    %1372 = vmatprep.subr.mxu0 0.0
    %1373 = vmatpush1.msra.mxu0 0.0
    %1374 = vmatprep.subr.mxu0 0.0
    %1375 = vmatpush1.msra.mxu0 0.0
    %1376 = vmatprep.subr.mxu0 0.0
    %1377 = vmatpush1.msra.mxu0 0.0
    %1378 = vmatprep.subr.mxu0 0.0
    %1379 = vmatpush1.msra.mxu0 0.0
    %1380 = vmatprep.subr.mxu0 0.0
    %1381 = vmatpush1.msra.mxu0 0.0
    %1382 = vmatprep.subr.mxu0 0.0
    %1383 = vmatpush1.msra.mxu0 0.0
    %1384 = vmatprep.subr.mxu0 0.0
    %1385 = vmatpush1.msra.mxu0 0.0
    %1386 = vmatprep.subr.mxu0 0.0
    %1387 = vmatpush1.msra.mxu0 0.0
    %1388 = vmatprep.subr.mxu0 0.0
    %1389 = vmatpush1.msra.mxu0 0.0
    %1390 = vmatprep.subr.mxu0 0.0
    %1391 = vmatpush1.msra.mxu0 0.0
    %1392 = vmatprep.subr.mxu0 0.0
    %1393 = vmatpush1.msra.mxu0 0.0
    %1394 = vmatprep.subr.mxu0 0.0
    %1395 = vmatpush1.msra.mxu0 0.0
    %1396 = vmatprep.subr.mxu0 0.0
    %1397 = vmatpush1.msra.mxu0 0.0
    %1398 = vmatprep.subr.mxu0 0.0
    %1399 = vmatpush1.msra.mxu0 0.0
    %1400 = vmatprep.subr.mxu0 0.0
    %1401 = vmatpush1.msra.mxu0 0.0
    %1402 = vmatprep.subr.mxu0 0.0
    %1403 = vmatpush1.msra.mxu0 0.0
    %1404 = vmatprep.subr.mxu0 0.0
    %1405 = vmatpush1.msra.mxu0 0.0
    %1406 = vmatprep.subr.mxu0 0.0
    %1407 = vmatpush1.msra.mxu0 0.0
    %1408 = vmatprep.subr.mxu0 0.0
    %1409 = vmatpush1.msra.mxu0 0.0
    %1410 = vmatprep.subr.mxu0 0.0
    %1411 = vmatpush1.msra.mxu0 0.0
    %1412 = vmatprep.subr.mxu0 0.0
    %1413 = vmatpush1.msra.mxu0 0.0
    %1414 = vmatprep.subr.mxu0 0.0
    %1415 = vmatpush1.msra.mxu0 0.0
    %1416 = vmatprep.subr.mxu0 0.0
    %1417 = vmatpush1.msra.mxu0 0.0
    %1418 = vmatprep.subr.mxu0 0.0
    %1419 = vmatpush1.msra.mxu0 0.0
    %1420 = vmatprep.subr.mxu0 0.0
    %1421 = vmatpush1.msra.mxu0 0.0
    %1422 = vmatprep.subr.mxu0 0.0
    %1423 = vmatpush1.msra.mxu0 0.0
    %1424 = vmatprep.subr.mxu0 0.0
    %1425 = vmatpush1.msra.mxu0 0.0
    %1426 = vmatprep.subr.mxu0 0.0
    %1427 = vmatpush1.msra.mxu0 0.0
    %1428 = vmatprep.subr.mxu0 0.0
    %1429 = vmatpush1.msra.mxu0 0.0
    %1430 = vmatprep.subr.mxu0 0.0
    %1431 = vmatpush1.msra.mxu0 0.0
    %1432 = vmatprep.mubr.f32.mxu0 0.0
    %1433 = vmatmul.mubr.f32.gmra.mrb[0].mxu0 %v1366
    %v1434 = vpop.f32.mrb[0].mxu0
    %v1435 = vadd.f32 0.0, %v1434
    %v1436 = vpop.f32.mrb[0].mxu0
    %1437 = vdwg.mxu0
    %vm1438 = vcmask 58368
    %1439 = vst.msk [vmem:[#allocation5] sm:$0x3] %vm1438, %v1435
    %v1440 = vsel %vm977, %v1346, -inf
    %1441 = vmax.xlane.f32.xlu0 %v1440
    %v1442 = vpop.xlane.xlu0 %1441
    %vm1443 = vcmp.eq.f32.partialorder %v1346, %v1442
    %vm1444 = vmand %vm1443, %vm718
    %v1445 = vsel %vm1444, %v711, 16
    %v1446 = vsel %vm977, %v1445, 2147483647
    %v1447 = vand.u32 %v1446, 65535
    %v1448 = vshra.s32 %v1446, 16
    %v1449 = vcvt.s32.f32 %v1447
    %v1450 = vcvt.s32.f32 %v1448
    %1451 = vmin.xlane.f32.xlu0 %v1450
    %v1452 = vpop.xlane.xlu0 %1451
    %vm1453 = vcmp.eq.f32.partialorder %v1450, %v1452
    %v1454 = vsel %vm1453, %v1449, inf
    %1455 = vmin.xlane.f32.xlu0 %v1454
    %v1456 = vpop.xlane.xlu0 %1455
    %v1457 = vcvt.f32.s32 %v1456
    %v1458 = vcvt.f32.s32 %v1452
    %v1459 = vshll.u32 %v1458, 16
    %v1460 = vadd.s32 %v1459, %v1457
    %v1461 = vsub.s32 %v1460, %v714
    %vm1462 = vcmask 1024
    %1463 = vst.msk [vmem:[%s3] sm:$0x3] %vm1462, %v1461
    %v1464 = vlog2.pop %v1442
    %v1465 = vmul.f32 %v1464, 0.6931472
    %1466 = vst.msk [vmem:[%s4] sm:$0x3] %vm1462, %v1465
    %vm1467 = vcmp.eq.s32.totalorder %v711, %v1460
    %v1468 = vsel %vm1467, 1, 0
    %v1469 = vcvt.s32.f32 %v1468
    %v1471 = vsel %vm962, %v1469, 0
    %v1473 = vsel %vm962, %v56, 0
    %1475 = vmatprep.subr.mxu0 0.0
    %1476 = vmatpush1.xpose.msra.mxu0 %v1473
    %1477 = vmatprep.subr.mxu0 0.0
    %1478 = vmatpush1.xpose.msra.mxu0 0.0
    %1479 = vmatprep.subr.mxu0 0.0
    %1480 = vmatpush1.xpose.msra.mxu0 0.0
    %1481 = vmatprep.subr.mxu0 0.0
    %1482 = vmatpush1.xpose.msra.mxu0 0.0
    %1483 = vmatprep.subr.mxu0 0.0
    %1484 = vmatpush1.xpose.msra.mxu0 0.0
    %1485 = vmatprep.subr.mxu0 0.0
    %1486 = vmatpush1.xpose.msra.mxu0 0.0
    %1487 = vmatprep.subr.mxu0 0.0
    %1488 = vmatpush1.xpose.msra.mxu0 0.0
    %1489 = vmatprep.subr.mxu0 0.0
    %1490 = vmatpush1.xpose.msra.mxu0 0.0
    %1491 = vmatprep.subr.mxu0 0.0
    %1492 = vmatpush1.xpose.msra.mxu0 0.0
    %1493 = vmatprep.subr.mxu0 0.0
    %1494 = vmatpush1.xpose.msra.mxu0 0.0
    %1495 = vmatprep.subr.mxu0 0.0
    %1496 = vmatpush1.xpose.msra.mxu0 0.0
    %1497 = vmatprep.subr.mxu0 0.0
    %1498 = vmatpush1.xpose.msra.mxu0 0.0
    %1499 = vmatprep.subr.mxu0 0.0
    %1500 = vmatpush1.xpose.msra.mxu0 0.0
    %1501 = vmatprep.subr.mxu0 0.0
    %1502 = vmatpush1.xpose.msra.mxu0 0.0
    %1503 = vmatprep.subr.mxu0 0.0
    %1504 = vmatpush1.xpose.msra.mxu0 0.0
    %1505 = vmatprep.subr.mxu0 0.0
    %1506 = vmatpush1.xpose.msra.mxu0 0.0
    %1507 = vmatprep.subr.mxu0 0.0
    %1508 = vmatpush1.xpose.msra.mxu0 0.0
    %1509 = vmatprep.subr.mxu0 0.0
    %1510 = vmatpush1.xpose.msra.mxu0 0.0
    %1511 = vmatprep.subr.mxu0 0.0
    %1512 = vmatpush1.xpose.msra.mxu0 0.0
    %1513 = vmatprep.subr.mxu0 0.0
    %1514 = vmatpush1.xpose.msra.mxu0 0.0
    %1515 = vmatprep.subr.mxu0 0.0
    %1516 = vmatpush1.xpose.msra.mxu0 0.0
    %1517 = vmatprep.subr.mxu0 0.0
    %1518 = vmatpush1.xpose.msra.mxu0 0.0
    %1519 = vmatprep.subr.mxu0 0.0
    %1520 = vmatpush1.xpose.msra.mxu0 0.0
    %1521 = vmatprep.subr.mxu0 0.0
    %1522 = vmatpush1.xpose.msra.mxu0 0.0
    %1523 = vmatprep.subr.mxu0 0.0
    %1524 = vmatpush1.xpose.msra.mxu0 0.0
    %1525 = vmatprep.subr.mxu0 0.0
    %1526 = vmatpush1.xpose.msra.mxu0 0.0
    %1527 = vmatprep.subr.mxu0 0.0
    %1528 = vmatpush1.xpose.msra.mxu0 0.0
    %1529 = vmatprep.subr.mxu0 0.0
    %1530 = vmatpush1.xpose.msra.mxu0 0.0
    %1531 = vmatprep.subr.mxu0 0.0
    %1532 = vmatpush1.xpose.msra.mxu0 0.0
    %1533 = vmatprep.subr.mxu0 0.0
    %1534 = vmatpush1.xpose.msra.mxu0 0.0
    %1535 = vmatprep.subr.mxu0 0.0
    %1536 = vmatpush1.xpose.msra.mxu0 0.0
    %1537 = vmatprep.subr.mxu0 0.0
    %1538 = vmatpush1.xpose.msra.mxu0 0.0
    %1539 = vmatprep.mubr.f32.mxu0 0.0
    %1540 = vmatmul.mubr.f32.gmra.mrb[0].mxu0 %v1471
    %v1541 = vpop.f32.mrb[0].mxu0
    %v1542 = vadd.f32 0.0, %v1541
    %v1543 = vpop.f32.mrb[0].mxu0
    %1544 = vdwg.mxu0
    %vm1545 = vcmask 25600
    %1546 = vst.msk [vmem:[#allocation6] sm:$0x3] %vm1545, %v1542
    // Predicated region
    $region14: #{drl4ssp_forward.1} parent=1 // pred_check
      _
    $region15: #{drl4ssp_forward.1} parent=1 // pred_check_branch
      %1548 = sbr.rel (0) target = $region17
    $region16: #{drl4ssp_forward.1} parent=1 // pred_region
      %s1550 = ssub.s32 32, 32
      %1551 = vsyncadd [#allocation4], %s1550
      %s1553 = sshll.u32 [#allocation5], 4
      %s1554 = int_to_ptr.vmem [resolvable:$true] %s1553
      %1556 = dma.vmem_to_hbm [thread:$0]  %s1554, 32, %s2, [#allocation4]
    $region17: #{drl4ssp_forward.1} parent=1 // pred_fallthru
      _
    // Predicated region
    $region18: #{drl4ssp_forward.1} parent=1 // pred_check
      _
    $region19: #{drl4ssp_forward.1} parent=1 // pred_check_branch
      %1558 = sbr.rel (0) target = $region21
    $region20: #{drl4ssp_forward.1} parent=1 // pred_region
      _
    $region21: #{drl4ssp_forward.1} parent=1 // pred_fallthru
      _
    // Predicated region
    $region22: #{drl4ssp_forward.1} parent=1 // pred_check
      _
    $region23: #{drl4ssp_forward.1} parent=1 // pred_check_branch
      %1560 = sbr.rel (0) target = $region25
    $region24: #{drl4ssp_forward.1} parent=1 // pred_region
      _
    $region25: #{drl4ssp_forward.1} parent=1 // pred_fallthru
      _
    // Predicated region
    $region26: #{drl4ssp_forward.1} parent=1 // pred_check
      _
    $region27: #{drl4ssp_forward.1} parent=1 // pred_check_branch
      %1562 = sbr.rel (0) target = $region29
    $region28: #{drl4ssp_forward.1} parent=1 // pred_region
      %s1564 = ssub.s32 32, 32
      %1565 = vsyncadd [#allocation7], %s1564
      %s1567 = sshll.u32 [#allocation6], 4
      %s1568 = int_to_ptr.vmem [resolvable:$true] %s1567
      %1570 = dma.vmem_to_hbm [thread:$0]  %s1568, 32, %s5, [#allocation7]
    $region29: #{drl4ssp_forward.1} parent=1 // pred_fallthru
      _
    // Predicated region
    $region30: #{drl4ssp_forward.1} parent=1 // pred_check
      _
    $region31: #{drl4ssp_forward.1} parent=1 // pred_check_branch
      %1572 = sbr.rel (0) target = $region33
    $region32: #{drl4ssp_forward.1} parent=1 // pred_region
      %1573 = dma.done [#allocation4], 32
    $region33: #{drl4ssp_forward.1} parent=1 // pred_fallthru
      _
    // Predicated region
    $region34: #{drl4ssp_forward.1} parent=1 // pred_check
      _
    $region35: #{drl4ssp_forward.1} parent=1 // pred_check_branch
      %1575 = sbr.rel (0) target = $region37
    $region36: #{drl4ssp_forward.1} parent=1 // pred_region
      _
    $region37: #{drl4ssp_forward.1} parent=1 // pred_fallthru
      _
    // Predicated region
    $region38: #{drl4ssp_forward.1} parent=1 // pred_check
      _
    $region39: #{drl4ssp_forward.1} parent=1 // pred_check_branch
      %1577 = sbr.rel (0) target = $region41
    $region40: #{drl4ssp_forward.1} parent=1 // pred_region
      _
    $region41: #{drl4ssp_forward.1} parent=1 // pred_fallthru
      _
    // Predicated region
    $region42: #{drl4ssp_forward.1} parent=1 // pred_check
      _
    $region43: #{drl4ssp_forward.1} parent=1 // pred_check_branch
      %1579 = sbr.rel (0) target = $region45
    $region44: #{drl4ssp_forward.1} parent=1 // pred_region
      %1580 = dma.done [#allocation7], 32
    $region45: #{drl4ssp_forward.1} parent=1 // pred_fallthru
      _
    %1581 = vsyncpa [#allocation3], 1
    %1582 = vsyncpa [#allocation4], 1
    %1583 = vsyncpa [#allocation7], 1

</llo_original>
